<compile_context>
chip_gen: v7x
topology: tpu7x:2x2x1
jax: 0.10.0
libtpu: 0.0.40
codegen_flags: <defaults>
</compile_context>

<pallas_src>
import functools

import jax
import jax.numpy as jnp
from jax.experimental import pallas as pl
from jax.experimental.pallas import tpu as pltpu


def _round_up(x, m):
    return ((x + m - 1) // m) * m


# ----------------------------------------------------------------------------
# Fused kernel: encoder projection + fused attn logits -> online-softmax
# pooling accumulators -> (on last seq step) pooling finalize + MLP head.
# Grid = (branch, batch_tile, seq_tile); seq axis is the reduction axis.
# ----------------------------------------------------------------------------
def fused_branch_kernel(x_ref, enc_w_ref, enc_b_ref,
                        w1_ref, b1_ref, w2_ref, b2_ref, w3_ref, b3_ref,
                        o_ref,
                        m_sc, l_sc, attn_sc, max_sc, sum_sc,
                        *, inv_seq):
    k = pl.program_id(2)
    last = pl.num_programs(2) - 1

    @pl.when(k == 0)
    def _():
        m_sc[...] = jnp.full(m_sc.shape, -jnp.inf, m_sc.dtype)
        l_sc[...] = jnp.zeros(l_sc.shape, l_sc.dtype)
        attn_sc[...] = jnp.zeros(attn_sc.shape, attn_sc.dtype)
        max_sc[...] = jnp.full(max_sc.shape, -jnp.inf, max_sc.dtype)
        sum_sc[...] = jnp.zeros(sum_sc.shape, sum_sc.dtype)

    # ---- encoder projection (+ fused attention logits) --------------------
    x = x_ref[...]                              # [tb, ts, E] bf16
    tb, ts, E = x.shape
    x2d = x.reshape(tb * ts, E)                 # layout-preserving (ts % 8 == 0)

    yfull2d = jnp.dot(x2d, enc_w_ref[...], preferred_element_type=jnp.float32)
    yfull2d = yfull2d + enc_b_ref[...]          # [tb*ts, D2p + 128]  (f32)
    dtot = yfull2d.shape[-1]
    d2p = dtot - 128
    yfull = yfull2d.reshape(tb, ts, dtot)
    y = yfull[:, :, :d2p]                       # encoder output  [tb, ts, D2p]
    logits = yfull[:, :, d2p:d2p + 1]           # attn logits     [tb, ts, 1]

    # ---- online softmax + pooling accumulators (all f32) ------------------
    m_prev = m_sc[...]                          # [tb, 1]
    m_new = jnp.maximum(m_prev, jnp.max(logits, axis=1))
    alpha = jnp.exp(m_prev - m_new)             # [tb, 1]
    p = jnp.exp(logits - m_new[:, None, :])     # [tb, ts, 1]

    l_sc[...] = alpha * l_sc[...] + jnp.sum(p, axis=1)
    attn_sc[...] = alpha * attn_sc[...] + jnp.sum(p * y, axis=1)
    max_sc[...] = jnp.maximum(max_sc[...], jnp.max(y, axis=1))
    sum_sc[...] = sum_sc[...] + jnp.sum(y, axis=1)
    m_sc[...] = m_new

    # ---- finalize: pooled features + MLP head (last seq step only) --------
    @pl.when(k == last)
    def _():
        inv_l = pl.reciprocal(l_sc[...], approx=True)         # [tb, 1]
        attn_pool = attn_sc[...] * inv_l                      # [tb, D2p]
        max_pool = max_sc[...]                                # [tb, D2p]
        avg_pool = sum_sc[...] * inv_seq                      # [tb, D2p]
        pooled = jnp.concatenate([attn_pool, max_pool, avg_pool], axis=1)

        h1 = jnp.dot(pooled.astype(w1_ref.dtype), w1_ref[...],
                     preferred_element_type=jnp.float32) + b1_ref[...]
        h1 = jnp.maximum(h1, 0.0)
        h2 = jnp.dot(h1.astype(w2_ref.dtype), w2_ref[...],
                     preferred_element_type=jnp.float32) + b2_ref[...]
        h2 = jnp.maximum(h2, 0.0)
        out = jnp.dot(h2.astype(w3_ref.dtype), w3_ref[...],
                      preferred_element_type=jnp.float32) + b3_ref[...]
        o_ref[...] = out.astype(o_ref.dtype)                  # lane-dense store


# ----------------------------------------------------------------------------
# Tile selection: fill the MXU M dimension, keep the per-step working set
# inside a conservative VMEM budget (sized for v7x's 64 MiB VMEM).
# ----------------------------------------------------------------------------
def _pick_tiles(B, S, E, dtot, act_budget_bytes):
    # seq tile: multiple of 8 that divides S (fall back to the whole sequence)
    ts = S
    if S % 8 == 0:
        ts = min(S, 512)
        while S % ts:
            ts -= 8
    # batch tile: aim for tb*ts ~ 512 MXU rows, multiple of 8 (or whole batch)
    tb = min(B, max(1, 512 // max(ts, 1)))
    if tb < B:
        tb = max(8, (tb // 8) * 8)
        while tb > 8 and B % tb:
            tb -= 8
        if B % tb:
            tb = B

    def _act_bytes(tb_):
        x_blk = 2 * tb_ * ts * E * 2             # double-buffered bf16 input
        y_int = tb_ * ts * dtot * 4              # f32 projection intermediate
        acc = tb_ * (3 * (dtot - 128) + 2) * 4   # online-softmax accumulators
        return x_blk + y_int + acc

    # shrink the batch tile if the activation working set blows the budget
    while tb > 8 and tb % 16 == 0 and tb < B and _act_bytes(tb) > act_budget_bytes:
        tb //= 2
    return tb, ts


def fairness_forward(emb_pair, enc_w, enc_b, aw, ab, w1, b1, w2, b2, w3, b3,
                     *, batch_tile=None, seq_tile=None,
                     vmem_limit_bytes=48 * 1024 * 1024):
    """emb_pair: [2, B, S, E] stacked branch embeddings -> [2, B, O] logits."""
    R, B, S, E = emb_pair.shape
    D2 = enc_w.shape[1]
    L1, L2, O = w1.shape[1], w2.shape[1], w3.shape[1]

    LANE = 128
    D2p = _round_up(D2, LANE)
    L1p = _round_up(L1, LANE)
    L2p = _round_up(L2, LANE)
    Op = _round_up(O, LANE)
    Dtot = D2p + LANE          # +128-lane group: col 0 = fused attn-logit column

    f32 = jnp.float32
    bf16 = jnp.bfloat16

    # ---- fold attentionLinear into the (linear) encoder projection ---------
    # attn = (x @ enc_w + enc_b) @ aw^T + ab = x @ (enc_w @ aw^T) + (enc_b @ aw^T + ab)
    attn_col_w = enc_w.astype(f32) @ aw.astype(f32).T                 # [E, 1]
    attn_col_b = enc_b.astype(f32) @ aw.astype(f32).T + ab.astype(f32)  # [1, 1]

    enc_w_ext = jnp.zeros((E, Dtot), f32)
    enc_w_ext = enc_w_ext.at[:, :D2].set(enc_w).at[:, D2p:D2p + 1].set(attn_col_w)
    enc_b_ext = jnp.zeros((1, Dtot), f32)
    enc_b_ext = enc_b_ext.at[:, :D2].set(enc_b).at[:, D2p:D2p + 1].set(attn_col_b)

    # ---- lane-dense (zero-padded) MLP weights -------------------------------
    w1p = jnp.zeros((3 * D2p, L1p), f32)
    w1p = w1p.at[0:D2, :L1].set(w1[0:D2])
    w1p = w1p.at[D2p:D2p + D2, :L1].set(w1[D2:2 * D2])
    w1p = w1p.at[2 * D2p:2 * D2p + D2, :L1].set(w1[2 * D2:3 * D2])
    b1p = jnp.zeros((1, L1p), f32).at[:, :L1].set(b1)
    w2p = jnp.zeros((L1p, L2p), f32).at[:L1, :L2].set(w2)
    b2p = jnp.zeros((1, L2p), f32).at[:, :L2].set(b2)
    w3p = jnp.zeros((L2p, Op), f32).at[:L2, :O].set(w3)
    b3p = jnp.zeros((1, Op), f32).at[:, :O].set(b3)

    # bf16 into the MXU (f32 accumulation inside the kernel); biases stay f32.
    x_bf = emb_pair.astype(bf16)
    enc_w_ext = enc_w_ext.astype(bf16)
    w1p, w2p, w3p = w1p.astype(bf16), w2p.astype(bf16), w3p.astype(bf16)

    # ---- tiling -------------------------------------------------------------
    tb_auto, ts_auto = _pick_tiles(B, S, E, Dtot,
                                   act_budget_bytes=vmem_limit_bytes // 2)
    tb = tb_auto if batch_tile is None else batch_tile
    ts = ts_auto if seq_tile is None else seq_tile
    assert B % tb == 0 and (tb == B or tb % 8 == 0)
    assert S % ts == 0 and (ts == S or ts % 8 == 0)

    grid = (R, B // tb, S // ts)   # branch & batch "parallel", seq "arbitrary"

    kernel = functools.partial(fused_branch_kernel, inv_seq=1.0 / S)

    out = pl.pallas_call(
        kernel,
        out_shape=jax.ShapeDtypeStruct((R, B, Op), jnp.float32),
        grid=grid,
        in_specs=[
            # activations: one branch / batch tile / seq tile per grid step
            pl.BlockSpec((None, tb, ts, E), lambda r, i, k: (r, i, k, 0)),
            # weights / biases: whole (padded) arrays, constant index map
            pl.BlockSpec((E, Dtot), lambda r, i, k: (0, 0)),
            pl.BlockSpec((1, Dtot), lambda r, i, k: (0, 0)),
            pl.BlockSpec((3 * D2p, L1p), lambda r, i, k: (0, 0)),
            pl.BlockSpec((1, L1p), lambda r, i, k: (0, 0)),
            pl.BlockSpec((L1p, L2p), lambda r, i, k: (0, 0)),
            pl.BlockSpec((1, L2p), lambda r, i, k: (0, 0)),
            pl.BlockSpec((L2p, Op), lambda r, i, k: (0, 0)),
            pl.BlockSpec((1, Op), lambda r, i, k: (0, 0)),
        ],
        # output block constant across the seq axis -> stays resident in VMEM,
        # written only on the last seq step (lane-dense, unmasked vst).
        out_specs=pl.BlockSpec((None, tb, Op), lambda r, i, k: (r, i, 0)),
        scratch_shapes=[
            pltpu.VMEM((tb, 1), jnp.float32),      # running max (online softmax)
            pltpu.VMEM((tb, 1), jnp.float32),      # running denom
            pltpu.VMEM((tb, D2p), jnp.float32),    # attention-pool accumulator
            pltpu.VMEM((tb, D2p), jnp.float32),    # max-pool accumulator
            pltpu.VMEM((tb, D2p), jnp.float32),    # sum accumulator (avg pool)
        ],
        compiler_params=pltpu.CompilerParams(
            dimension_semantics=("parallel", "parallel", "arbitrary"),
            vmem_limit_bytes=vmem_limit_bytes),
    )(x_bf, enc_w_ext, enc_b_ext, w1p, b1p, w2p, b2p, w3p, b3p)

    return out[:, :, :O]


# ----------------------------------------------------------------------------
# Pure-JAX reference (for correctness check only)
# ----------------------------------------------------------------------------
def reference_branch(emb, params):
    enc_w, enc_b, aw, ab, w1, b1, w2, b2, w3, b3 = params
    x = jnp.einsum("bse,eh->bsh", emb, enc_w) + enc_b[0]
    attn = jnp.sum(x * aw[0][None, None, :], axis=-1) + ab[0, 0]
    p = jax.nn.softmax(attn, axis=1)
    attn_pool = jnp.sum(p[..., None] * x, axis=1)
    max_pool = jnp.max(x, axis=1)
    avg_pool = jnp.mean(x, axis=1)
    result = jnp.concatenate([attn_pool, max_pool, avg_pool], axis=1)
    h1 = jax.nn.relu(result @ w1 + b1[0])
    h2 = jax.nn.relu(h1 @ w2 + b2[0])
    return h2 @ w3 + b3[0]


if __name__ == "__main__":
    # Small, forward-consistent shapes.
    B, S = 2, 8
    vocab = 64
    inputDim = 32          # stand-in for BERT hidden size
    lstm_out = 16
    D2 = 2 * lstm_out      # self.lstm_out in fullyConnected
    L1, L2, O = 32, 16, 2  # linear_out1, linear_out2, output_size

    key = jax.random.PRNGKey(0)
    ks = jax.random.split(key, 12)

    # Deterministic parameters.
    emb_table = 0.02 * jax.random.normal(ks[0], (vocab, inputDim), jnp.float32)
    enc_w = jax.random.normal(ks[1], (inputDim, D2), jnp.float32) / jnp.sqrt(inputDim)
    enc_b = 0.01 * jax.random.normal(ks[2], (1, D2), jnp.float32)
    aw = jax.random.normal(ks[3], (1, D2), jnp.float32) / jnp.sqrt(D2)
    ab = 0.01 * jax.random.normal(ks[4], (1, 1), jnp.float32)
    w1 = jax.random.normal(ks[5], (3 * D2, L1), jnp.float32) / jnp.sqrt(3 * D2)
    b1 = 0.01 * jax.random.normal(ks[6], (1, L1), jnp.float32)
    w2 = jax.random.normal(ks[7], (L1, L2), jnp.float32) / jnp.sqrt(L1)
    b2 = 0.01 * jax.random.normal(ks[8], (1, L2), jnp.float32)
    w3 = jax.random.normal(ks[9], (L2, O), jnp.float32) / jnp.sqrt(L2)
    b3 = 0.01 * jax.random.normal(ks[10], (1, O), jnp.float32)
    params = (enc_w, enc_b, aw, ab, w1, b1, w2, b2, w3, b3)

    # fairness input: a pair of token-id batches (x0, x1).
    ids0 = jax.random.randint(ks[11], (B, S), 0, vocab)
    ids1 = (ids0 + 7) % vocab

    # Embedder stand-in (plain-JAX glue: deterministic embedding lookup).
    emb0 = jnp.take(emb_table, ids0, axis=0)         # [B, S, inputDim]
    emb1 = jnp.take(emb_table, ids1, axis=0)         # [B, S, inputDim]
    # Stack both fairness branches on a leading axis -> one fused pallas_call.
    emb_pair = jnp.stack([emb0, emb1], axis=0)       # [2, B, S, inputDim]

    y = fairness_forward(emb_pair, enc_w, enc_b, aw, ab,
                         w1, b1, w2, b2, w3, b3)     # [2, B, O]
    jax.block_until_ready(y)
    y0, y1 = y[0], y[1]

    # Correctness check against pure-JAX f32 reference (kernel uses bf16 MXU
    # inputs, so tolerances are loosened accordingly).
    r0 = reference_branch(emb0, params)
    r1 = reference_branch(emb1, params)
    assert jnp.allclose(y0, r0, atol=3e-2, rtol=3e-2), (y0, r0)
    assert jnp.allclose(y1, r1, atol=3e-2, rtol=3e-2), (y1, r1)

    print("KERNEL_OK")
</pallas_src>

<mosaic_0001>
module attributes {stable_mosaic.version = 11 : i64} {
  func.func @fused_branch_kernel(%arg0: i32, %arg1: i32, %arg2: i32, %arg3: memref<1x2x8x32xbf16, #tpu.memory_space<vmem>>, %arg4: memref<32x256xbf16, #tpu.memory_space<vmem>>, %arg5: memref<1x256xf32, #tpu.memory_space<vmem>>, %arg6: memref<384x128xbf16, #tpu.memory_space<vmem>>, %arg7: memref<1x128xf32, #tpu.memory_space<vmem>>, %arg8: memref<128x128xbf16, #tpu.memory_space<vmem>>, %arg9: memref<1x128xf32, #tpu.memory_space<vmem>>, %arg10: memref<128x128xbf16, #tpu.memory_space<vmem>>, %arg11: memref<1x128xf32, #tpu.memory_space<vmem>>, %arg12: memref<1x2x128xf32, #tpu.memory_space<vmem>>, %arg13: memref<2x1xf32, #tpu.memory_space<vmem>>, %arg14: memref<2x1xf32, #tpu.memory_space<vmem>>, %arg15: memref<2x128xf32, #tpu.memory_space<vmem>>, %arg16: memref<2x128xf32, #tpu.memory_space<vmem>>, %arg17: memref<2x128xf32, #tpu.memory_space<vmem>>) attributes {dimension_semantics = [#tpu.dimension_semantics<parallel>, #tpu.dimension_semantics<parallel>, #tpu.dimension_semantics<arbitrary>], iteration_bounds = array<i64: 2, 1, 1>, scalar_prefetch = 0 : i64, scratch_operands = 5 : i64, tpu.core_type = #tpu.core_type<tc>, window_params = [{transform_indices = @transform_0, window_bounds = array<i64: 1, 2, 8, 32>}, {pipeline_mode = #tpu.pipeline_mode<synchronous>, transform_indices = @transform_1, window_bounds = array<i64: 32, 256>}, {pipeline_mode = #tpu.pipeline_mode<synchronous>, transform_indices = @transform_2, window_bounds = array<i64: 1, 256>}, {pipeline_mode = #tpu.pipeline_mode<synchronous>, transform_indices = @transform_3, window_bounds = array<i64: 384, 128>}, {pipeline_mode = #tpu.pipeline_mode<synchronous>, transform_indices = @transform_4, window_bounds = array<i64: 1, 128>}, {pipeline_mode = #tpu.pipeline_mode<synchronous>, transform_indices = @transform_5, window_bounds = array<i64: 128, 128>}, {pipeline_mode = #tpu.pipeline_mode<synchronous>, transform_indices = @transform_6, window_bounds = array<i64: 1, 128>}, {pipeline_mode = #tpu.pipeline_mode<synchronous>, transform_indices = @transform_7, window_bounds = array<i64: 128, 128>}, {pipeline_mode = #tpu.pipeline_mode<synchronous>, transform_indices = @transform_8, window_bounds = array<i64: 1, 128>}, {transform_indices = @transform_9, window_bounds = array<i64: 1, 2, 128>}]} {
    %c0_i32 = arith.constant 0 : i32
    %0 = arith.cmpi eq, %arg2, %c0_i32 : i32
    %1 = arith.extui %0 : i1 to i32
    %c0_i32_0 = arith.constant 0 : i32
    %2 = arith.cmpi ne, %1, %c0_i32_0 : i32
    scf.if %2 {
      %cst_35 = arith.constant 0xFF800000 : f32
      %48 = vector.broadcast %cst_35 : f32 to vector<2x1xf32>
      %c0_36 = arith.constant 0 : index
      %c0_37 = arith.constant 0 : index
      %49 = vector.load %arg13[%c0_36, %c0_37] : memref<2x1xf32, #tpu.memory_space<vmem>>, vector<2x1xf32>
      tpu.vector_store %arg13[%c0_36, %c0_37], %48 {strides = array<i32>} : memref<2x1xf32, #tpu.memory_space<vmem>>, vector<2x1xf32>,
      %cst_38 = arith.constant 0.000000e+00 : f32
      %50 = vector.broadcast %cst_38 : f32 to vector<2x1xf32>
      %c0_39 = arith.constant 0 : index
      %c0_40 = arith.constant 0 : index
      %51 = vector.load %arg14[%c0_39, %c0_40] : memref<2x1xf32, #tpu.memory_space<vmem>>, vector<2x1xf32>
      tpu.vector_store %arg14[%c0_39, %c0_40], %50 {strides = array<i32>} : memref<2x1xf32, #tpu.memory_space<vmem>>, vector<2x1xf32>,
      %cst_41 = arith.constant 0.000000e+00 : f32
      %52 = vector.broadcast %cst_41 : f32 to vector<2x128xf32>
      %c0_42 = arith.constant 0 : index
      %c0_43 = arith.constant 0 : index
      %53 = vector.load %arg15[%c0_42, %c0_43] : memref<2x128xf32, #tpu.memory_space<vmem>>, vector<2x128xf32>
      tpu.vector_store %arg15[%c0_42, %c0_43], %52 {strides = array<i32>} : memref<2x128xf32, #tpu.memory_space<vmem>>, vector<2x128xf32>,
      %cst_44 = arith.constant 0xFF800000 : f32
      %54 = vector.broadcast %cst_44 : f32 to vector<2x128xf32>
      %c0_45 = arith.constant 0 : index
      %c0_46 = arith.constant 0 : index
      %55 = vector.load %arg16[%c0_45, %c0_46] : memref<2x128xf32, #tpu.memory_space<vmem>>, vector<2x128xf32>
      tpu.vector_store %arg16[%c0_45, %c0_46], %54 {strides = array<i32>} : memref<2x128xf32, #tpu.memory_space<vmem>>, vector<2x128xf32>,
      %cst_47 = arith.constant 0.000000e+00 : f32
      %56 = vector.broadcast %cst_47 : f32 to vector<2x128xf32>
      %c0_48 = arith.constant 0 : index
      %c0_49 = arith.constant 0 : index
      %57 = vector.load %arg17[%c0_48, %c0_49] : memref<2x128xf32, #tpu.memory_space<vmem>>, vector<2x128xf32>
      tpu.vector_store %arg17[%c0_48, %c0_49], %56 {strides = array<i32>} : memref<2x128xf32, #tpu.memory_space<vmem>>, vector<2x128xf32>,
    } else {
    }
    %c0 = arith.constant 0 : index
    %c0_1 = arith.constant 0 : index
    %c0_2 = arith.constant 0 : index
    %c0_3 = arith.constant 0 : index
    %3 = vector.load %arg3[%c0, %c0_1, %c0_2, %c0_3] : memref<1x2x8x32xbf16, #tpu.memory_space<vmem>>, vector<1x2x8x32xbf16>
    %4 = vector.shape_cast %3 : vector<1x2x8x32xbf16> to vector<2x8x32xbf16>
    %5 = vector.shape_cast %4 : vector<2x8x32xbf16> to vector<16x32xbf16>
    %c0_4 = arith.constant 0 : index
    %c0_5 = arith.constant 0 : index
    %6 = vector.load %arg4[%c0_4, %c0_5] : memref<32x256xbf16, #tpu.memory_space<vmem>>, vector<32x256xbf16>
    %cst = arith.constant dense<0.000000e+00> : vector<16x256xf32>
    %7 = tpu.matmul %5, %6, %cst {dimension_numbers = #tpu.dot_dimension_numbers<[1], [0], [0], [1], [0, 0, 1, 1], [], []>} : vector<16x32xbf16>, vector<32x256xbf16>, vector<16x256xf32> -> vector<16x256xf32>
    %c0_6 = arith.constant 0 : index
    %c0_7 = arith.constant 0 : index
    %8 = vector.load %arg5[%c0_6, %c0_7] : memref<1x256xf32, #tpu.memory_space<vmem>>, vector<1x256xf32>
    %9 = vector.broadcast %8 : vector<1x256xf32> to vector<16x256xf32>
    %10 = arith.addf %7, %9 : vector<16x256xf32>
    %11 = vector.shape_cast %10 : vector<16x256xf32> to vector<2x8x256xf32>
    %12 = vector.extract_strided_slice %11 {offsets = [0, 0, 0], sizes = [2, 8, 128], strides = [1, 1, 1]} : vector<2x8x256xf32> to vector<2x8x128xf32>
    %13 = vector.extract_strided_slice %11 {offsets = [0, 0, 128], sizes = [2, 8, 1], strides = [1, 1, 1]} : vector<2x8x256xf32> to vector<2x8x1xf32>
    %c0_8 = arith.constant 0 : index
    %c0_9 = arith.constant 0 : index
    %14 = vector.load %arg13[%c0_8, %c0_9] : memref<2x1xf32, #tpu.memory_space<vmem>>, vector<2x1xf32>
    %cst_10 = arith.constant dense<0xFF800000> : vector<2x1xf32>
    %15 = vector.multi_reduction <maximumf>, %13, %cst_10 [1] : vector<2x8x1xf32> to vector<2x1xf32>
    %16 = arith.maximumf %14, %15 : vector<2x1xf32>
    %17 = arith.subf %14, %16 : vector<2x1xf32>
    %18 = math.exp %17 : vector<2x1xf32>
    %19 = vector.shape_cast %16 : vector<2x1xf32> to vector<2x1x1xf32>
    %20 = vector.broadcast %19 : vector<2x1x1xf32> to vector<2x8x1xf32>
    %21 = arith.subf %13, %20 : vector<2x8x1xf32>
    %22 = math.exp %21 : vector<2x8x1xf32>
    %c0_11 = arith.constant 0 : index
    %c0_12 = arith.constant 0 : index
    %23 = vector.load %arg14[%c0_11, %c0_12] : memref<2x1xf32, #tpu.memory_space<vmem>>, vector<2x1xf32>
    %24 = arith.mulf %18, %23 : vector<2x1xf32>
    %cst_13 = arith.constant dense<0.000000e+00> : vector<2x1xf32>
    %25 = vector.multi_reduction <add>, %22, %cst_13 [1] : vector<2x8x1xf32> to vector<2x1xf32>
    %26 = arith.addf %24, %25 : vector<2x1xf32>
    %c0_14 = arith.constant 0 : index
    %c0_15 = arith.constant 0 : index
    %27 = vector.load %arg14[%c0_14, %c0_15] : memref<2x1xf32, #tpu.memory_space<vmem>>, vector<2x1xf32>
    tpu.vector_store %arg14[%c0_14, %c0_15], %26 {strides = array<i32>} : memref<2x1xf32, #tpu.memory_space<vmem>>, vector<2x1xf32>,
    %c0_16 = arith.constant 0 : index
    %c0_17 = arith.constant 0 : index
    %28 = vector.load %arg15[%c0_16, %c0_17] : memref<2x128xf32, #tpu.memory_space<vmem>>, vector<2x128xf32>
    %29 = vector.broadcast %18 : vector<2x1xf32> to vector<2x128xf32>
    %30 = arith.mulf %29, %28 : vector<2x128xf32>
    %31 = vector.broadcast %22 : vector<2x8x1xf32> to vector<2x8x128xf32>
    %32 = arith.mulf %31, %12 : vector<2x8x128xf32>
    %cst_18 = arith.constant dense<0.000000e+00> : vector<2x128xf32>
    %33 = vector.multi_reduction <add>, %32, %cst_18 [1] : vector<2x8x128xf32> to vector<2x128xf32>
    %34 = arith.addf %30, %33 : vector<2x128xf32>
    %c0_19 = arith.constant 0 : index
    %c0_20 = arith.constant 0 : index
    %35 = vector.load %arg15[%c0_19, %c0_20] : memref<2x128xf32, #tpu.memory_space<vmem>>, vector<2x128xf32>
    tpu.vector_store %arg15[%c0_19, %c0_20], %34 {strides = array<i32>} : memref<2x128xf32, #tpu.memory_space<vmem>>, vector<2x128xf32>,
    %c0_21 = arith.constant 0 : index
    %c0_22 = arith.constant 0 : index
    %36 = vector.load %arg16[%c0_21, %c0_22] : memref<2x128xf32, #tpu.memory_space<vmem>>, vector<2x128xf32>
    %cst_23 = arith.constant dense<0xFF800000> : vector<2x128xf32>
    %37 = vector.multi_reduction <maximumf>, %12, %cst_23 [1] : vector<2x8x128xf32> to vector<2x128xf32>
    %38 = arith.maximumf %36, %37 : vector<2x128xf32>
    %c0_24 = arith.constant 0 : index
    %c0_25 = arith.constant 0 : index
    %39 = vector.load %arg16[%c0_24, %c0_25] : memref<2x128xf32, #tpu.memory_space<vmem>>, vector<2x128xf32>
    tpu.vector_store %arg16[%c0_24, %c0_25], %38 {strides = array<i32>} : memref<2x128xf32, #tpu.memory_space<vmem>>, vector<2x128xf32>,
    %c0_26 = arith.constant 0 : index
    %c0_27 = arith.constant 0 : index
    %40 = vector.load %arg17[%c0_26, %c0_27] : memref<2x128xf32, #tpu.memory_space<vmem>>, vector<2x128xf32>
    %cst_28 = arith.constant dense<0.000000e+00> : vector<2x128xf32>
    %41 = vector.multi_reduction <add>, %12, %cst_28 [1] : vector<2x8x128xf32> to vector<2x128xf32>
    %42 = arith.addf %40, %41 : vector<2x128xf32>
    %c0_29 = arith.constant 0 : index
    %c0_30 = arith.constant 0 : index
    %43 = vector.load %arg17[%c0_29, %c0_30] : memref<2x128xf32, #tpu.memory_space<vmem>>, vector<2x128xf32>
    tpu.vector_store %arg17[%c0_29, %c0_30], %42 {strides = array<i32>} : memref<2x128xf32, #tpu.memory_space<vmem>>, vector<2x128xf32>,
    %c0_31 = arith.constant 0 : index
    %c0_32 = arith.constant 0 : index
    %44 = vector.load %arg13[%c0_31, %c0_32] : memref<2x1xf32, #tpu.memory_space<vmem>>, vector<2x1xf32>
    tpu.vector_store %arg13[%c0_31, %c0_32], %16 {strides = array<i32>} : memref<2x1xf32, #tpu.memory_space<vmem>>, vector<2x1xf32>,
    %c0_i32_33 = arith.constant 0 : i32
    %45 = arith.cmpi eq, %arg2, %c0_i32_33 : i32
    %46 = arith.extui %45 : i1 to i32
    %c0_i32_34 = arith.constant 0 : i32
    %47 = arith.cmpi ne, %46, %c0_i32_34 : i32
    scf.if %47 {
      %c0_35 = arith.constant 0 : index
      %c0_36 = arith.constant 0 : index
      %48 = vector.load %arg14[%c0_35, %c0_36] : memref<2x1xf32, #tpu.memory_space<vmem>>, vector<2x1xf32>
      %49 = tpu.reciprocal %48 {approx = true} : vector<2x1xf32> -> vector<2x1xf32>
      %c0_37 = arith.constant 0 : index
      %c0_38 = arith.constant 0 : index
      %50 = vector.load %arg15[%c0_37, %c0_38] : memref<2x128xf32, #tpu.memory_space<vmem>>, vector<2x128xf32>
      %51 = vector.broadcast %49 : vector<2x1xf32> to vector<2x128xf32>
      %52 = arith.mulf %50, %51 : vector<2x128xf32>
      %c0_39 = arith.constant 0 : index
      %c0_40 = arith.constant 0 : index
      %53 = vector.load %arg16[%c0_39, %c0_40] : memref<2x128xf32, #tpu.memory_space<vmem>>, vector<2x128xf32>
      %c0_41 = arith.constant 0 : index
      %c0_42 = arith.constant 0 : index
      %54 = vector.load %arg17[%c0_41, %c0_42] : memref<2x128xf32, #tpu.memory_space<vmem>>, vector<2x128xf32>
      %cst_43 = arith.constant 1.250000e-01 : f32
      %55 = vector.broadcast %cst_43 : f32 to vector<2x128xf32>
      %56 = arith.mulf %54, %55 : vector<2x128xf32>
      %57 = tpu.concatenate %52, %53, %56 in 1 : vector<2x128xf32>, vector<2x128xf32>, vector<2x128xf32> -> vector<2x384xf32>
      %58 = arith.truncf %57 : vector<2x384xf32> to vector<2x384xbf16>
      %c0_44 = arith.constant 0 : index
      %c0_45 = arith.constant 0 : index
      %59 = vector.load %arg6[%c0_44, %c0_45] : memref<384x128xbf16, #tpu.memory_space<vmem>>, vector<384x128xbf16>
      %cst_46 = arith.constant dense<0.000000e+00> : vector<2x128xf32>
      %60 = tpu.matmul %58, %59, %cst_46 {dimension_numbers = #tpu.dot_dimension_numbers<[1], [0], [0], [1], [0, 0, 1, 1], [], []>} : vector<2x384xbf16>, vector<384x128xbf16>, vector<2x128xf32> -> vector<2x128xf32>
      %c0_47 = arith.constant 0 : index
      %c0_48 = arith.constant 0 : index
      %61 = vector.load %arg7[%c0_47, %c0_48] : memref<1x128xf32, #tpu.memory_space<vmem>>, vector<1x128xf32>
      %62 = vector.broadcast %61 : vector<1x128xf32> to vector<2x128xf32>
      %63 = arith.addf %60, %62 : vector<2x128xf32>
      %cst_49 = arith.constant 0.000000e+00 : f32
      %64 = vector.broadcast %cst_49 : f32 to vector<2x128xf32>
      %65 = arith.maximumf %63, %64 : vector<2x128xf32>
      %66 = arith.truncf %65 : vector<2x128xf32> to vector<2x128xbf16>
      %c0_50 = arith.constant 0 : index
      %c0_51 = arith.constant 0 : index
      %67 = vector.load %arg8[%c0_50, %c0_51] : memref<128x128xbf16, #tpu.memory_space<vmem>>, vector<128x128xbf16>
      %cst_52 = arith.constant dense<0.000000e+00> : vector<2x128xf32>
      %68 = tpu.matmul %66, %67, %cst_52 {dimension_numbers = #tpu.dot_dimension_numbers<[1], [0], [0], [1], [0, 0, 1, 1], [], []>} : vector<2x128xbf16>, vector<128x128xbf16>, vector<2x128xf32> -> vector<2x128xf32>
      %c0_53 = arith.constant 0 : index
      %c0_54 = arith.constant 0 : index
      %69 = vector.load %arg9[%c0_53, %c0_54] : memref<1x128xf32, #tpu.memory_space<vmem>>, vector<1x128xf32>
      %70 = vector.broadcast %69 : vector<1x128xf32> to vector<2x128xf32>
      %71 = arith.addf %68, %70 : vector<2x128xf32>
      %cst_55 = arith.constant 0.000000e+00 : f32
      %72 = vector.broadcast %cst_55 : f32 to vector<2x128xf32>
      %73 = arith.maximumf %71, %72 : vector<2x128xf32>
      %74 = arith.truncf %73 : vector<2x128xf32> to vector<2x128xbf16>
      %c0_56 = arith.constant 0 : index
      %c0_57 = arith.constant 0 : index
      %75 = vector.load %arg10[%c0_56, %c0_57] : memref<128x128xbf16, #tpu.memory_space<vmem>>, vector<128x128xbf16>
      %cst_58 = arith.constant dense<0.000000e+00> : vector<2x128xf32>
      %76 = tpu.matmul %74, %75, %cst_58 {dimension_numbers = #tpu.dot_dimension_numbers<[1], [0], [0], [1], [0, 0, 1, 1], [], []>} : vector<2x128xbf16>, vector<128x128xbf16>, vector<2x128xf32> -> vector<2x128xf32>
      %c0_59 = arith.constant 0 : index
      %c0_60 = arith.constant 0 : index
      %77 = vector.load %arg11[%c0_59, %c0_60] : memref<1x128xf32, #tpu.memory_space<vmem>>, vector<1x128xf32>
      %78 = vector.broadcast %77 : vector<1x128xf32> to vector<2x128xf32>
      %79 = arith.addf %76, %78 : vector<2x128xf32>
      %c0_61 = arith.constant 0 : index
      %c0_62 = arith.constant 0 : index
      %c0_63 = arith.constant 0 : index
      %80 = vector.load %arg12[%c0_61, %c0_62, %c0_63] : memref<1x2x128xf32, #tpu.memory_space<vmem>>, vector<1x2x128xf32>
      %81 = vector.shape_cast %80 : vector<1x2x128xf32> to vector<2x128xf32>
      %82 = vector.shape_cast %79 : vector<2x128xf32> to vector<1x2x128xf32>
      tpu.vector_store %arg12[%c0_61, %c0_62, %c0_63], %82 {strides = array<i32>} : memref<1x2x128xf32, #tpu.memory_space<vmem>>, vector<1x2x128xf32>,
    } else {
    }
    return
  }
  func.func @transform_0(%arg0: i32, %arg1: i32, %arg2: i32) -> (i32, i32, i32, i32) {
    %c0_i32 = arith.constant 0 : i32
    %c0_i32_0 = arith.constant 0 : i32
    return %arg0, %arg1, %arg2, %c0_i32 : i32, i32, i32, i32
  }
  func.func @transform_1(%arg0: i32, %arg1: i32, %arg2: i32) -> (i32, i32) {
    %c0_i32 = arith.constant 0 : i32
    %c0_i32_0 = arith.constant 0 : i32
    %c0_i32_1 = arith.constant 0 : i32
    return %c0_i32, %c0_i32_0 : i32, i32
  }
  func.func @transform_2(%arg0: i32, %arg1: i32, %arg2: i32) -> (i32, i32) {
    %c0_i32 = arith.constant 0 : i32
    %c0_i32_0 = arith.constant 0 : i32
    %c0_i32_1 = arith.constant 0 : i32
    return %c0_i32, %c0_i32_0 : i32, i32
  }
  func.func @transform_3(%arg0: i32, %arg1: i32, %arg2: i32) -> (i32, i32) {
    %c0_i32 = arith.constant 0 : i32
    %c0_i32_0 = arith.constant 0 : i32
    %c0_i32_1 = arith.constant 0 : i32
    return %c0_i32, %c0_i32_0 : i32, i32
  }
  func.func @transform_4(%arg0: i32, %arg1: i32, %arg2: i32) -> (i32, i32) {
    %c0_i32 = arith.constant 0 : i32
    %c0_i32_0 = arith.constant 0 : i32
    %c0_i32_1 = arith.constant 0 : i32
    return %c0_i32, %c0_i32_0 : i32, i32
  }
  func.func @transform_5(%arg0: i32, %arg1: i32, %arg2: i32) -> (i32, i32) {
    %c0_i32 = arith.constant 0 : i32
    %c0_i32_0 = arith.constant 0 : i32
    %c0_i32_1 = arith.constant 0 : i32
    return %c0_i32, %c0_i32_0 : i32, i32
  }
  func.func @transform_6(%arg0: i32, %arg1: i32, %arg2: i32) -> (i32, i32) {
    %c0_i32 = arith.constant 0 : i32
    %c0_i32_0 = arith.constant 0 : i32
    %c0_i32_1 = arith.constant 0 : i32
    return %c0_i32, %c0_i32_0 : i32, i32
  }
  func.func @transform_7(%arg0: i32, %arg1: i32, %arg2: i32) -> (i32, i32) {
    %c0_i32 = arith.constant 0 : i32
    %c0_i32_0 = arith.constant 0 : i32
    %c0_i32_1 = arith.constant 0 : i32
    return %c0_i32, %c0_i32_0 : i32, i32
  }
  func.func @transform_8(%arg0: i32, %arg1: i32, %arg2: i32) -> (i32, i32) {
    %c0_i32 = arith.constant 0 : i32
    %c0_i32_0 = arith.constant 0 : i32
    %c0_i32_1 = arith.constant 0 : i32
    return %c0_i32, %c0_i32_0 : i32, i32
  }
  func.func @transform_9(%arg0: i32, %arg1: i32, %arg2: i32) -> (i32, i32, i32) {
    %c0_i32 = arith.constant 0 : i32
    %c0_i32_0 = arith.constant 0 : i32
    return %arg0, %arg1, %c0_i32 : i32, i32, i32
  }
}

</mosaic_0001>

<llo_original>
// kernel: tpu_custom_call.1
$region0: #{tpu_custom_call.1}
  #allocation0 [shape = 'u32[]', space=smem, size = 0x4, offset = 0x4, fixed_abs, tag = 'smem constant byte address 0x4 - core index']
  #allocation1 [shape = 'u32[144,128]{1,0:T(1,128)}', space=vmem, size = 0x12000, scoped, tag = 'internal scratch']
  #allocation2 [shape = 'f32[2,1]{1,0:T(2,128)}', space=vmem, size = 0x400, scoped, tag = 'scratch operand']
  #allocation3 [shape = 'f32[2,1]{1,0:T(2,128)}', space=vmem, size = 0x400, scoped, tag = 'scratch operand']
  #allocation4 [shape = 'f32[2,128]{1,0:T(2,128)}', space=vmem, size = 0x400, scoped, tag = 'scratch operand']
  #allocation5 [shape = 'f32[2,128]{1,0:T(2,128)}', space=vmem, size = 0x400, scoped, tag = 'scratch operand']
  #allocation6 [shape = 'f32[2,128]{1,0:T(2,128)}', space=vmem, size = 0x400, scoped, tag = 'scratch operand']
  %s0 = inlined_call_operand.hbm [shape: bf16[2,2,8,32], index: 0, kind: input, shape index: {}]
  %s1 = inlined_call_operand.hbm [shape: bf16[32,256], index: 1, kind: input, shape index: {}]
  %s2 = inlined_call_operand.vmem [shape: f32[1,256], index: 2, kind: input, shape index: {}]
  %s3 = inlined_call_operand.hbm [shape: bf16[384,128], index: 3, kind: input, shape index: {}]
  %s4 = inlined_call_operand.vmem [shape: f32[1,128], index: 4, kind: input, shape index: {}]
  %s5 = inlined_call_operand.hbm [shape: bf16[128,128], index: 5, kind: input, shape index: {}]
  %s6 = inlined_call_operand.vmem [shape: f32[1,128], index: 6, kind: input, shape index: {}]
  %s7 = inlined_call_operand.hbm [shape: bf16[128,128], index: 7, kind: input, shape index: {}]
  %s8 = inlined_call_operand.vmem [shape: f32[1,128], index: 8, kind: input, shape index: {}]
  %s9 = inlined_call_operand.hbm [shape: f32[2,2,128], index: 9, kind: output, shape index: {}]
  %s10 = sld [smem:[#allocation0]]
  $region97: #{tpu_custom_call.1} parent=0
    _
  %s12 = ssub.s32 1, %s10
  %s13 = scalar_select 0, %s12, %s10
  $region1: #{tpu_custom_call.1} parent=0
    #allocation7 [shape = 'u8[8192]{0}', space=vmem, size = 0x2000, scoped, tag = 'input window, operand 0']
    #allocation8 [shape = 's32[2]{0}', space=sflag, size = 0x8, scoped, tag = 'scoped memory for tpu_custom_call.1']
    #allocation9 [shape = 's32[2]{0}', space=sflag, size = 0x8, scoped, tag = 'scoped memory for tpu_custom_call.1']
    #allocation10 [shape = 'u8[16384]{0}', space=vmem, size = 0x4000, scoped, tag = 'input window, operand 1, single buffered']
    #allocation11 [shape = 's32[1]{0}', space=sflag, size = 0x4, scoped, tag = 'scoped memory for tpu_custom_call.1']
    #allocation12 [shape = 'u8[98304]{0}', space=vmem, size = 0x18000, scoped, tag = 'input window, operand 3, single buffered']
    #allocation13 [shape = 'u8[32768]{0}', space=vmem, size = 0x8000, scoped, tag = 'input window, operand 5, single buffered']
    #allocation14 [shape = 's32[1]{0}', space=sflag, size = 0x4, scoped, tag = 'scoped memory for tpu_custom_call.1']
    #allocation15 [shape = 'u8[32768]{0}', space=vmem, size = 0x8000, scoped, tag = 'input window, operand 7, single buffered']
    #allocation16 [shape = 'u8[2048]{0}', space=vmem, size = 0x800, scoped, tag = 'output window, operand 0']
    %14 = vsyncpa [#allocation8], 0
    %s15 = scalar_lea.sflag [#allocation8], 1
    %16 = vsyncpa %s15, 0
    %17 = vsyncpa [#allocation11], 0
    %18 = vsyncpa [#allocation14], 0
    %19 = vsyncpa [#allocation9], 0
    %s20 = scalar_lea.sflag [#allocation9], 1
    %21 = vsyncpa %s20, 0
    loop: start=0, step=1, limit=4
    $region2: #{tpu_custom_call.1} parent=1 // loop_pre_header
      _
    $region3: #{tpu_custom_call.1} parent=1 // loop_header
      %s23 = sphi 0, %s27
      %p24 = scmp.ge.s32.totalorder %s23, 4
      %s30 = sphi 0, %s49
      %s31 = sphi 0, %s45
      %s32 = sphi 0, %s41
      %s33 = sphi 0, %s30
      %s34 = sphi 0, %s31
      %s35 = sphi 0, %s32
      %s36 = sphi 0, %s33
      %s37 = sphi 0, %s34
      %s38 = sphi 0, %s35
      %s56 = sphi 0, %s58
      %s59 = sphi 0, %s56
      %s60 = sphi 0, %s59
      %s76 = sphi 0, %s60
      %s80 = sphi 0, %s80
      %s82 = sphi 0, %s80
      %s83 = sphi 0, %s82
      %s97 = sphi 0, %s83
      %s101 = sphi 0, %s101
      %s103 = sphi 0, %s101
      %s104 = sphi 0, %s103
      %s118 = sphi 0, %s104
      %s122 = sphi 0, %s122
      %s124 = sphi 0, %s122
      %s125 = sphi 0, %s124
      %s139 = sphi 0, %s125
      %s143 = sphi 0, %s143
      %s145 = sphi 0, %s143
      %s146 = sphi 0, %s145
      %s160 = sphi 0, %s146
      %s164 = sphi 0, %s164
      %s166 = sphi 0, %s164
      %s167 = sphi 0, %s166
      %s181 = sphi 0, %s167
      %s185 = sphi 0, %s185
      %s187 = sphi 0, %s185
      %s188 = sphi 0, %s187
      %s202 = sphi 0, %s188
      %s206 = sphi 0, %s206
      %s208 = sphi 0, %s206
      %s209 = sphi 0, %s208
      %s223 = sphi 0, %s209
      %s227 = sphi 0, %s227
      %s229 = sphi 0, %s227
      %s230 = sphi 0, %s229
      %s244 = sphi 0, %s230
      %s252 = sphi 0, %s254
      %s255 = sphi 0, %s252
      %s256 = sphi 0, %s255
      %s272 = sphi 0, %s256
    $region4: #{tpu_custom_call.1} parent=1 // loop_header_branch
      %26 = sbr.rel (%p24) target = $region8
    $region5: #{tpu_custom_call.1} parent=1 // loop_body
      %s28 = ssub.s32 %s23, 1
      %s29 = ssub.s32 %s23, 2
      %s39 = sadd.s32 1, %s32
      %p40 = scmp.ge.s32.totalorder %s39, 1
      %s41 = scalar_select %p40, 0, %s39
      %s42 = sadd.s32 1, %s31
      %s43 = scalar_select %p40, %s42, %s31
      %p44 = scmp.ge.s32.totalorder %s43, 1
      %s45 = scalar_select %p44, 0, %s43
      %s46 = sadd.s32 1, %s30
      %s47 = scalar_select %p44, %s46, %s30
      %p48 = scmp.ge.s32.totalorder %s47, 2
      %s49 = scalar_select %p48, 0, %s47
      %s50 = ssub.s32 %s30, %s49
      %s51 = ssub.s32 %s31, %s45
      %s52 = sor.u32 %s50, %s51
      %s53 = ssub.s32 %s32, %s41
      %s54 = sor.u32 %s52, %s53
      %p55 = scmp.eq.s32.totalorder %s54, 0
      %s57 = sadd.s32 %s56, 1
      %s58 = scalar_select %p55, %s56, %s57
      %p61 = pneg %p55
      %p62 = scmp.eq.s32.totalorder %s23, 1
      %p63 = por %p61, %p62
      %p64 = scmp.ne.s32.totalorder %s56, %s59
      %p65 = scmp.eq.s32.totalorder %s23, 0
      %p66 = por %p64, %p65
      %p67 = scmp.ne.s32.totalorder %s56, %s59
      %p68 = scmp.eq.s32.totalorder %s28, 1
      %p69 = por %p67, %p68
      %p70 = scmp.ne.s32.totalorder %s59, %s60
      %p71 = scmp.eq.s32.totalorder %s28, 0
      %p72 = por %p70, %p71
      %p73 = scmp.ne.s32.totalorder %s59, %s60
      %p74 = scmp.eq.s32.totalorder %s29, 1
      %p75 = por %p73, %p74
      %p77 = scmp.ne.s32.totalorder %s60, %s76
      %p78 = scmp.eq.s32.totalorder %s29, 0
      %p79 = por %p77, %p78
      %s81 = sadd.s32 %s80, 1
      %p84 = scmp.eq.s32.totalorder %s23, 1
      %p85 = scmp.ne.s32.totalorder %s80, %s82
      %p86 = scmp.eq.s32.totalorder %s23, 0
      %p87 = por %p85, %p86
      %p88 = scmp.ne.s32.totalorder %s80, %s82
      %p89 = scmp.eq.s32.totalorder %s28, 1
      %p90 = por %p88, %p89
      %p91 = scmp.ne.s32.totalorder %s82, %s83
      %p92 = scmp.eq.s32.totalorder %s28, 0
      %p93 = por %p91, %p92
      %p94 = scmp.ne.s32.totalorder %s82, %s83
      %p95 = scmp.eq.s32.totalorder %s29, 1
      %p96 = por %p94, %p95
      %p98 = scmp.ne.s32.totalorder %s83, %s97
      %p99 = scmp.eq.s32.totalorder %s29, 0
      %p100 = por %p98, %p99
      %s102 = sadd.s32 %s101, 1
      %p105 = scmp.eq.s32.totalorder %s23, 1
      %p106 = scmp.ne.s32.totalorder %s101, %s103
      %p107 = scmp.eq.s32.totalorder %s23, 0
      %p108 = por %p106, %p107
      %p109 = scmp.ne.s32.totalorder %s101, %s103
      %p110 = scmp.eq.s32.totalorder %s28, 1
      %p111 = por %p109, %p110
      %p112 = scmp.ne.s32.totalorder %s103, %s104
      %p113 = scmp.eq.s32.totalorder %s28, 0
      %p114 = por %p112, %p113
      %p115 = scmp.ne.s32.totalorder %s103, %s104
      %p116 = scmp.eq.s32.totalorder %s29, 1
      %p117 = por %p115, %p116
      %p119 = scmp.ne.s32.totalorder %s104, %s118
      %p120 = scmp.eq.s32.totalorder %s29, 0
      %p121 = por %p119, %p120
      %s123 = sadd.s32 %s122, 1
      %p126 = scmp.eq.s32.totalorder %s23, 1
      %p127 = scmp.ne.s32.totalorder %s122, %s124
      %p128 = scmp.eq.s32.totalorder %s23, 0
      %p129 = por %p127, %p128
      %p130 = scmp.ne.s32.totalorder %s122, %s124
      %p131 = scmp.eq.s32.totalorder %s28, 1
      %p132 = por %p130, %p131
      %p133 = scmp.ne.s32.totalorder %s124, %s125
      %p134 = scmp.eq.s32.totalorder %s28, 0
      %p135 = por %p133, %p134
      %p136 = scmp.ne.s32.totalorder %s124, %s125
      %p137 = scmp.eq.s32.totalorder %s29, 1
      %p138 = por %p136, %p137
      %p140 = scmp.ne.s32.totalorder %s125, %s139
      %p141 = scmp.eq.s32.totalorder %s29, 0
      %p142 = por %p140, %p141
      %s144 = sadd.s32 %s143, 1
      %p147 = scmp.eq.s32.totalorder %s23, 1
      %p148 = scmp.ne.s32.totalorder %s143, %s145
      %p149 = scmp.eq.s32.totalorder %s23, 0
      %p150 = por %p148, %p149
      %p151 = scmp.ne.s32.totalorder %s143, %s145
      %p152 = scmp.eq.s32.totalorder %s28, 1
      %p153 = por %p151, %p152
      %p154 = scmp.ne.s32.totalorder %s145, %s146
      %p155 = scmp.eq.s32.totalorder %s28, 0
      %p156 = por %p154, %p155
      %p157 = scmp.ne.s32.totalorder %s145, %s146
      %p158 = scmp.eq.s32.totalorder %s29, 1
      %p159 = por %p157, %p158
      %p161 = scmp.ne.s32.totalorder %s146, %s160
      %p162 = scmp.eq.s32.totalorder %s29, 0
      %p163 = por %p161, %p162
      %s165 = sadd.s32 %s164, 1
      %p168 = scmp.eq.s32.totalorder %s23, 1
      %p169 = scmp.ne.s32.totalorder %s164, %s166
      %p170 = scmp.eq.s32.totalorder %s23, 0
      %p171 = por %p169, %p170
      %p172 = scmp.ne.s32.totalorder %s164, %s166
      %p173 = scmp.eq.s32.totalorder %s28, 1
      %p174 = por %p172, %p173
      %p175 = scmp.ne.s32.totalorder %s166, %s167
      %p176 = scmp.eq.s32.totalorder %s28, 0
      %p177 = por %p175, %p176
      %p178 = scmp.ne.s32.totalorder %s166, %s167
      %p179 = scmp.eq.s32.totalorder %s29, 1
      %p180 = por %p178, %p179
      %p182 = scmp.ne.s32.totalorder %s167, %s181
      %p183 = scmp.eq.s32.totalorder %s29, 0
      %p184 = por %p182, %p183
      %s186 = sadd.s32 %s185, 1
      %p189 = scmp.eq.s32.totalorder %s23, 1
      %p190 = scmp.ne.s32.totalorder %s185, %s187
      %p191 = scmp.eq.s32.totalorder %s23, 0
      %p192 = por %p190, %p191
      %p193 = scmp.ne.s32.totalorder %s185, %s187
      %p194 = scmp.eq.s32.totalorder %s28, 1
      %p195 = por %p193, %p194
      %p196 = scmp.ne.s32.totalorder %s187, %s188
      %p197 = scmp.eq.s32.totalorder %s28, 0
      %p198 = por %p196, %p197
      %p199 = scmp.ne.s32.totalorder %s187, %s188
      %p200 = scmp.eq.s32.totalorder %s29, 1
      %p201 = por %p199, %p200
      %p203 = scmp.ne.s32.totalorder %s188, %s202
      %p204 = scmp.eq.s32.totalorder %s29, 0
      %p205 = por %p203, %p204
      %s207 = sadd.s32 %s206, 1
      %p210 = scmp.eq.s32.totalorder %s23, 1
      %p211 = scmp.ne.s32.totalorder %s206, %s208
      %p212 = scmp.eq.s32.totalorder %s23, 0
      %p213 = por %p211, %p212
      %p214 = scmp.ne.s32.totalorder %s206, %s208
      %p215 = scmp.eq.s32.totalorder %s28, 1
      %p216 = por %p214, %p215
      %p217 = scmp.ne.s32.totalorder %s208, %s209
      %p218 = scmp.eq.s32.totalorder %s28, 0
      %p219 = por %p217, %p218
      %p220 = scmp.ne.s32.totalorder %s208, %s209
      %p221 = scmp.eq.s32.totalorder %s29, 1
      %p222 = por %p220, %p221
      %p224 = scmp.ne.s32.totalorder %s209, %s223
      %p225 = scmp.eq.s32.totalorder %s29, 0
      %p226 = por %p224, %p225
      %s228 = sadd.s32 %s227, 1
      %p231 = scmp.eq.s32.totalorder %s23, 1
      %p232 = scmp.ne.s32.totalorder %s227, %s229
      %p233 = scmp.eq.s32.totalorder %s23, 0
      %p234 = por %p232, %p233
      %p235 = scmp.ne.s32.totalorder %s227, %s229
      %p236 = scmp.eq.s32.totalorder %s28, 1
      %p237 = por %p235, %p236
      %p238 = scmp.ne.s32.totalorder %s229, %s230
      %p239 = scmp.eq.s32.totalorder %s28, 0
      %p240 = por %p238, %p239
      %p241 = scmp.ne.s32.totalorder %s229, %s230
      %p242 = scmp.eq.s32.totalorder %s29, 1
      %p243 = por %p241, %p242
      %p245 = scmp.ne.s32.totalorder %s230, %s244
      %p246 = scmp.eq.s32.totalorder %s29, 0
      %p247 = por %p245, %p246
      %s248 = ssub.s32 %s30, %s49
      %s249 = ssub.s32 %s31, %s45
      %s250 = sor.u32 %s248, %s249
      %p251 = scmp.eq.s32.totalorder %s250, 0
      %s253 = sadd.s32 %s252, 1
      %s254 = scalar_select %p251, %s252, %s253
      %p257 = pneg %p251
      %p258 = scmp.eq.s32.totalorder %s23, 1
      %p259 = por %p257, %p258
      %p260 = scmp.ne.s32.totalorder %s252, %s255
      %p261 = scmp.eq.s32.totalorder %s23, 0
      %p262 = por %p260, %p261
      %p263 = scmp.ne.s32.totalorder %s252, %s255
      %p264 = scmp.eq.s32.totalorder %s28, 1
      %p265 = por %p263, %p264
      %p266 = scmp.ne.s32.totalorder %s255, %s256
      %p267 = scmp.eq.s32.totalorder %s28, 0
      %p268 = por %p266, %p267
      %p269 = scmp.ne.s32.totalorder %s255, %s256
      %p270 = scmp.eq.s32.totalorder %s29, 1
      %p271 = por %p269, %p270
      %p273 = scmp.ne.s32.totalorder %s256, %s272
      %p274 = scmp.eq.s32.totalorder %s29, 0
      %p275 = por %p273, %p274
      %p276 = scmp.le.s32.totalorder 1, %s23
      %p277 = scmp.lt.s32.totalorder %s23, 3
      %p278 = pnand %p276, %p277
      %p279 = pneg %p278
      // Predicated region
      $region9: #{tpu_custom_call.1} parent=5 // pred_check
        _
      $region10: #{tpu_custom_call.1} parent=5 // pred_check_branch
        %281 = sbr.rel (%p278) target = $region12
      $region11: #{tpu_custom_call.1} parent=5 // pred_region
        %s282 = ssub.s32 %s23, 1
        // Predicated region
        $region13: #{tpu_custom_call.1} parent=11 // pred_check
          %p283 = pneg %p93
        $region14: #{tpu_custom_call.1} parent=11 // pred_check_branch
          %285 = sbr.rel (%p283) target = $region16
        $region15: #{tpu_custom_call.1} parent=11 // pred_region
          %s287 = ssub.s32 512, 512
          %288 = vsyncadd [#allocation11], %s287
          %s289 = sshll.u32 [#allocation10], 4
          %s290 = int_to_ptr.vmem [resolvable:$true] %s289
          %295 = dma.hbm_to_vmem [thread:$0]  %s1, 512, %s290, [#allocation11], 128, 128, 8
        $region16: #{tpu_custom_call.1} parent=11 // pred_fallthru
          _
        // Predicated region
        $region17: #{tpu_custom_call.1} parent=11 // pred_check
          %p296 = pneg %p114
        $region18: #{tpu_custom_call.1} parent=11 // pred_check_branch
          %298 = sbr.rel (%p296) target = $region20
        $region19: #{tpu_custom_call.1} parent=11 // pred_region
          _
        $region20: #{tpu_custom_call.1} parent=11 // pred_fallthru
          _
        // Predicated region
        $region21: #{tpu_custom_call.1} parent=11 // pred_check
          %p299 = pneg %p135
        $region22: #{tpu_custom_call.1} parent=11 // pred_check_branch
          %301 = sbr.rel (%p299) target = $region24
        $region23: #{tpu_custom_call.1} parent=11 // pred_region
          %s303 = ssub.s32 3072, 3072
          %304 = vsyncadd [#allocation11], %s303
          %s305 = sshll.u32 [#allocation12], 4
          %s306 = int_to_ptr.vmem [resolvable:$true] %s305
          %311 = dma.hbm_to_vmem [thread:$0]  %s3, 3072, %s306, [#allocation11], 64, 64, 4
        $region24: #{tpu_custom_call.1} parent=11 // pred_fallthru
          _
        // Predicated region
        $region25: #{tpu_custom_call.1} parent=11 // pred_check
          %p312 = pneg %p156
        $region26: #{tpu_custom_call.1} parent=11 // pred_check_branch
          %314 = sbr.rel (%p312) target = $region28
        $region27: #{tpu_custom_call.1} parent=11 // pred_region
          _
        $region28: #{tpu_custom_call.1} parent=11 // pred_fallthru
          _
        // Predicated region
        $region29: #{tpu_custom_call.1} parent=11 // pred_check
          %p315 = pneg %p177
        $region30: #{tpu_custom_call.1} parent=11 // pred_check_branch
          %317 = sbr.rel (%p315) target = $region32
        $region31: #{tpu_custom_call.1} parent=11 // pred_region
          %s319 = ssub.s32 1024, 1024
          %320 = vsyncadd [#allocation14], %s319
          %s321 = sshll.u32 [#allocation13], 4
          %s322 = int_to_ptr.vmem [resolvable:$true] %s321
          %327 = dma.hbm_to_vmem [thread:$0]  %s5, 1024, %s322, [#allocation14], 64, 64, 4
        $region32: #{tpu_custom_call.1} parent=11 // pred_fallthru
          _
        // Predicated region
        $region33: #{tpu_custom_call.1} parent=11 // pred_check
          %p328 = pneg %p198
        $region34: #{tpu_custom_call.1} parent=11 // pred_check_branch
          %330 = sbr.rel (%p328) target = $region36
        $region35: #{tpu_custom_call.1} parent=11 // pred_region
          _
        $region36: #{tpu_custom_call.1} parent=11 // pred_fallthru
          _
        // Predicated region
        $region37: #{tpu_custom_call.1} parent=11 // pred_check
          %p331 = pneg %p219
        $region38: #{tpu_custom_call.1} parent=11 // pred_check_branch
          %333 = sbr.rel (%p331) target = $region40
        $region39: #{tpu_custom_call.1} parent=11 // pred_region
          %s335 = ssub.s32 1024, 1024
          %336 = vsyncadd [#allocation14], %s335
          %s337 = sshll.u32 [#allocation15], 4
          %s338 = int_to_ptr.vmem [resolvable:$true] %s337
          %343 = dma.hbm_to_vmem [thread:$0]  %s7, 1024, %s338, [#allocation14], 64, 64, 4
        $region40: #{tpu_custom_call.1} parent=11 // pred_fallthru
          _
        // Predicated region
        $region41: #{tpu_custom_call.1} parent=11 // pred_check
          %p344 = pneg %p240
        $region42: #{tpu_custom_call.1} parent=11 // pred_check_branch
          %346 = sbr.rel (%p344) target = $region44
        $region43: #{tpu_custom_call.1} parent=11 // pred_region
          _
        $region44: #{tpu_custom_call.1} parent=11 // pred_fallthru
          _
      $region12: #{tpu_custom_call.1} parent=5 // pred_fallthru
        _
      %p347 = scmp.lt.s32.totalorder %s23, 2
      // Predicated region
      $region45: #{tpu_custom_call.1} parent=5 // pred_check
        %p348 = pneg %p347
      $region46: #{tpu_custom_call.1} parent=5 // pred_check_branch
        %350 = sbr.rel (%p348) target = $region48
      $region47: #{tpu_custom_call.1} parent=5 // pred_region
        // Predicated region
        $region49: #{tpu_custom_call.1} parent=47 // pred_check
          %p351 = pneg %p66
        $region50: #{tpu_custom_call.1} parent=47 // pred_check_branch
          %353 = sbr.rel (%p351) target = $region52
        $region51: #{tpu_custom_call.1} parent=47 // pred_region
          %s354 = sand.u32 %s56, 1
          %s355 = scalar_lea.sflag [#allocation8], %s354
          %s356 = sand.u32 %s56, 1
          %s357 = smul.addr %s356, 8
          %s358 = scalar_lea.vmem [#allocation7], %s357
          %s359 = smul.u32 2, %s31
          %s361 = ssub.s32 128, 128
          %362 = vsyncadd %s355, %s361
          %s363 = sadd.s32 %s32, %s359
          %s364 = smul.addr %s30, 2
          %s365 = sadd.s32 %s363, %s364
          %s366 = smul.addr %s365, 64
          %s367 = scalar_lea.hbm %s0, %s366
          %s368 = sshll.u32 %s358, 4
          %s369 = int_to_ptr.vmem [resolvable:$true] %s368
          %374 = dma.hbm_to_vmem [thread:$0]  %s367, 128, %s369, %s355, 64, 64, 4
        $region52: #{tpu_custom_call.1} parent=47 // pred_fallthru
          _
      $region48: #{tpu_custom_call.1} parent=5 // pred_fallthru
        _
      %p375 = scmp.le.s32.totalorder 1, %s23
      %p376 = scmp.lt.s32.totalorder %s23, 3
      %p377 = pnand %p375, %p376
      %p378 = pneg %p377
      // Predicated region
      $region53: #{tpu_custom_call.1} parent=5 // pred_check
        _
      $region54: #{tpu_custom_call.1} parent=5 // pred_check_branch
        %380 = sbr.rel (%p377) target = $region56
      $region55: #{tpu_custom_call.1} parent=5 // pred_region
        %s381 = ssub.s32 %s23, 1
        %s382 = sand.u32 %s59, 1
        %s383 = scalar_lea.sflag [#allocation8], %s382
        %s384 = sand.u32 %s59, 1
        %s385 = smul.addr %s384, 8
        %s386 = scalar_lea.vmem [#allocation7], %s385
        // Predicated region
        $region57: #{tpu_custom_call.1} parent=55 // pred_check
          %p387 = pneg %p72
        $region58: #{tpu_custom_call.1} parent=55 // pred_check_branch
          %389 = sbr.rel (%p387) target = $region60
        $region59: #{tpu_custom_call.1} parent=55 // pred_region
          %390 = dma.done %s383, 128
        $region60: #{tpu_custom_call.1} parent=55 // pred_fallthru
          _
        // Predicated region
        $region61: #{tpu_custom_call.1} parent=55 // pred_check
          %p391 = pneg %p93
        $region62: #{tpu_custom_call.1} parent=55 // pred_check_branch
          %393 = sbr.rel (%p391) target = $region64
        $region63: #{tpu_custom_call.1} parent=55 // pred_region
          %394 = dma.done [#allocation11], 512
        $region64: #{tpu_custom_call.1} parent=55 // pred_fallthru
          _
        // Predicated region
        $region65: #{tpu_custom_call.1} parent=55 // pred_check
          %p395 = pneg %p135
        $region66: #{tpu_custom_call.1} parent=55 // pred_check_branch
          %397 = sbr.rel (%p395) target = $region68
        $region67: #{tpu_custom_call.1} parent=55 // pred_region
          %398 = dma.done [#allocation11], 3072
        $region68: #{tpu_custom_call.1} parent=55 // pred_fallthru
          _
        // Predicated region
        $region69: #{tpu_custom_call.1} parent=55 // pred_check
          %p399 = pneg %p177
        $region70: #{tpu_custom_call.1} parent=55 // pred_check_branch
          %401 = sbr.rel (%p399) target = $region72
        $region71: #{tpu_custom_call.1} parent=55 // pred_region
          %402 = dma.done [#allocation14], 1024
        $region72: #{tpu_custom_call.1} parent=55 // pred_fallthru
          _
        // Predicated region
        $region73: #{tpu_custom_call.1} parent=55 // pred_check
          %p403 = pneg %p219
        $region74: #{tpu_custom_call.1} parent=55 // pred_check_branch
          %405 = sbr.rel (%p403) target = $region76
        $region75: #{tpu_custom_call.1} parent=55 // pred_region
          %406 = dma.done [#allocation14], 1024
        $region76: #{tpu_custom_call.1} parent=55 // pred_fallthru
          _
        %s407 = sand.u32 %s59, 1
        %s408 = scalar_lea.sflag [#allocation8], %s407
        %s409 = sand.u32 %s59, 1
        %s410 = smul.addr %s409, 8
        %s411 = scalar_lea.vmem [#allocation7], %s410
        %p412 = pneg %p72
        %p413 = pneg %p69
        %p414 = pneg %p93
        %p415 = pneg %p90
        %p416 = pneg %p114
        %p417 = pneg %p111
        %p418 = pneg %p135
        %p419 = pneg %p132
        %p420 = pneg %p156
        %p421 = pneg %p153
        %p422 = pneg %p177
        %p423 = pneg %p174
        %p424 = pneg %p198
        %p425 = pneg %p195
        %p426 = pneg %p219
        %p427 = pneg %p216
        %p428 = pneg %p240
        %p429 = pneg %p237
        %p430 = pneg %p268
        %p431 = pneg %p265
        %s432 = sand.u32 %s255, 1
        %s433 = scalar_lea.sflag [#allocation9], %s432
        %s434 = sand.u32 %s255, 1
        %s435 = smul.addr %s434, 2
        %s436 = scalar_lea.vmem [#allocation16], %s435
        %s437 = smul.u32 2, %s34
        %p439 = scmp.eq.s32.totalorder %s35, 0
        // Predicated region
        $region77: #{tpu_custom_call.1} parent=55 // pred_check
          %p440 = pneg %p439
        $region78: #{tpu_custom_call.1} parent=55 // pred_check_branch
          %442 = sbr.rel (%p440) target = $region80
        $region79: #{tpu_custom_call.1} parent=55 // pred_region
          %vm443 = vcmask 1024
          %444 = vst.msk [vmem:[#allocation2] sm:$0x3] %vm443, -inf
          %445 = vst.msk [vmem:[#allocation3] sm:$0x3] %vm443, 0.0
          %446 = vst [vmem:[#allocation4] sm:$0x3] 0.0
          %447 = vst [vmem:[#allocation5] sm:$0x3] -inf
          %448 = vst [vmem:[#allocation6] sm:$0x3] 0.0
        $region80: #{tpu_custom_call.1} parent=55 // pred_fallthru
          _
        %v449 = vld [vmem:[%s386] sm:$0xf]
        %v450 = vld [vmem:[%s386 + $0x4] sm:$0xf]
        %v451 = vld [vmem:[#allocation10] sm:$0xff]
        %v452 = vld [vmem:[#allocation10 + $0x8] sm:$0xff]
        %v453 = vld [vmem:[#allocation10 + $0x10] sm:$0xff]
        %v454 = vld [vmem:[#allocation10 + $0x18] sm:$0xff]
        %v455 = vld [vmem:[%s2] sm:$0x3]
        %v457 = vlaneseq
        %v458 = vshrl.u32 %v457, 7
        %v459 = vsub.s32 0, %v458
        %v460 = vrot.slane %v455, %v459
        %v461 = vlaneseq
        %v462 = vshrl.u32 %v461, 7
        %v463 = vsub.s32 1, %v462
        %v464 = vrot.slane %v455, %v463
        %v469 = vunpack.c.l.b16 %v449
        %v470 = vunpack.c.l.b16 %v450
        %v471 = vpack.c.b16 %v470, %v469
        %v476 = vunpack.c.l.b16 %v451
        %v477 = vunpack.c.h.b16 %v451
        %v478 = vunpack.c.l.b16 %v452
        %v479 = vunpack.c.h.b16 %v452
        %v480 = vunpack.c.l.b16 %v453
        %v481 = vunpack.c.h.b16 %v453
        %v482 = vunpack.c.l.b16 %v454
        %v483 = vunpack.c.h.b16 %v454
        %v484 = vpack.c.b16 %v478, %v476
        %v485 = vpack.c.b16 %v479, %v477
        %v486 = vpack.c.b16 %v482, %v480
        %v487 = vpack.c.b16 %v483, %v481
        %vm492 = vcmask 261120
        %v494 = vsel %vm492, %v471, 0
        %496 = vmatprep.subr.bf16.mxu0 %v485
        %497 = vmatpush1.bf16.msra.mxu0 %v484
        %498 = vmatprep.subr.bf16.mxu0 %v487
        %499 = vmatpush1.bf16.msra.mxu0 %v486
        %500 = vmatprep.subr.bf16.mxu0 0
        %501 = vmatpush1.bf16.msra.mxu0 0
        %502 = vmatprep.subr.bf16.mxu0 0
        %503 = vmatpush1.bf16.msra.mxu0 0
        %504 = vmatprep.subr.bf16.mxu0 0
        %505 = vmatpush1.bf16.msra.mxu0 0
        %506 = vmatprep.subr.bf16.mxu0 0
        %507 = vmatpush1.bf16.msra.mxu0 0
        %508 = vmatprep.subr.bf16.mxu0 0
        %509 = vmatpush1.bf16.msra.mxu0 0
        %510 = vmatprep.subr.bf16.mxu0 0
        %511 = vmatpush1.bf16.msra.mxu0 0
        %512 = vmatprep.subr.bf16.mxu0 0
        %513 = vmatpush1.bf16.msra.mxu0 0
        %514 = vmatprep.subr.bf16.mxu0 0
        %515 = vmatpush1.bf16.msra.mxu0 0
        %516 = vmatprep.subr.bf16.mxu0 0
        %517 = vmatpush1.bf16.msra.mxu0 0
        %518 = vmatprep.subr.bf16.mxu0 0
        %519 = vmatpush1.bf16.msra.mxu0 0
        %520 = vmatprep.subr.bf16.mxu0 0
        %521 = vmatpush1.bf16.msra.mxu0 0
        %522 = vmatprep.subr.bf16.mxu0 0
        %523 = vmatpush1.bf16.msra.mxu0 0
        %524 = vmatprep.subr.bf16.mxu0 0
        %525 = vmatpush1.bf16.msra.mxu0 0
        %526 = vmatprep.subr.bf16.mxu0 0
        %527 = vmatpush1.bf16.msra.mxu0 0
        %528 = vmatprep.mubr.bf16.mxu0 0
        %529 = vmatmul.mubr.bf16.gmra.mrb[0].mxu0 %v494
        %v530 = vpop.f32.mrb[0].mxu0
        %v531 = vadd.f32 %v460, %v530
        %v532 = vpop.f32.mrb[0].mxu0
        %v533 = vadd.f32 %v464, %v532
        %v534 = vpop.f32.mrb[0].mxu0
        %v535 = vadd.f32 %v460, %v534
        %v536 = vpop.f32.mrb[0].mxu0
        %v537 = vadd.f32 %v464, %v536
        %538 = vdwg.mxu0
        %v539 = vld [vmem:[#allocation2] sm:$0x3]
        %vm540 = vcmask 7168
        %v541 = vsel %vm540, %v533, -inf
        %v542 = vrot.slane %v541, 4
        %v543 = vmax.f32 %v541, %v542
        %v544 = vrot.slane %v543, 2
        %v545 = vmax.f32 %v543, %v544
        %v546 = vrot.slane %v545, 1
        %v547 = vmax.f32 %v545, %v546
        %v548 = vsel %vm540, %v537, -inf
        %v549 = vrot.slane %v548, 4
        %v550 = vmax.f32 %v548, %v549
        %v551 = vrot.slane %v550, 2
        %v552 = vmax.f32 %v550, %v551
        %v553 = vrot.slane %v552, 1
        %v554 = vmax.f32 %v552, %v553
        %vm557 = vcmask 1041409
        %v558 = vsel %vm557, %v554, %v547
        %v560 = vmax.f32 %v539, %v558
        %v561 = vsub.f32 %v539, %v560
        %v562 = vmul.f32 %v561, 1.442695
        %v563 = vpow.pop %v562
        %v566 = vunpack.c.l.s4 1966171168
        %v567 = vunpack.c.0.s8 %v566
        %v568 = vlaneseq
        %v569 = vshrl.u32 %v568, 7
        %v570 = vsub.s32 %v567, %v569
        %v571 = vrot.slane %v560, %v570
        %v572 = vcombine.high %v571, %v571
        %v574 = vunpack.c.l.s4 1966171168
        %v575 = vunpack.c.0.s8 %v574
        %v576 = vlaneseq
        %v577 = vshrl.u32 %v576, 7
        %v578 = vsub.s32 %v575, %v577
        %v579 = vrot.slane %v571, %v578
        %v581 = vunpack.c.l.s4 1966171168
        %v582 = vunpack.c.0.s8 %v581
        %v583 = vlaneseq
        %v584 = vshrl.u32 %v583, 7
        %v585 = vsub.s32 %v582, %v584
        %v586 = vrot.slane %v572, %v585
        %v587 = vlaneseq
        %v588 = vshrl.u32 %v587, 7
        %v589 = vsub.s32 0, %v588
        %v590 = vrot.slane %v579, %v589
        %v591 = vlaneseq
        %v592 = vshrl.u32 %v591, 7
        %v593 = vsub.s32 0, %v592
        %v594 = vrot.slane %v586, %v593
        %v597 = vsub.f32 %v533, %v590
        %v598 = vsub.f32 %v537, %v594
        %v599 = vmul.f32 %v597, 1.442695
        %v600 = vpow.pop %v599
        %v601 = vmul.f32 %v598, 1.442695
        %v602 = vpow.pop %v601
        %v603 = vld [vmem:[#allocation3] sm:$0x3]
        %v604 = vmul.f32 %v563, %v603
        %v605 = vsel %vm540, %v600, 0.0
        %v606 = vrot.slane %v605, 4
        %v607 = vadd.f32 %v605, %v606
        %v608 = vrot.slane %v607, 2
        %v609 = vadd.f32 %v607, %v608
        %v610 = vrot.slane %v609, 1
        %v611 = vadd.f32 %v609, %v610
        %v612 = vsel %vm540, %v602, 0.0
        %v613 = vrot.slane %v612, 4
        %v614 = vadd.f32 %v612, %v613
        %v615 = vrot.slane %v614, 2
        %v616 = vadd.f32 %v614, %v615
        %v617 = vrot.slane %v616, 1
        %v618 = vadd.f32 %v616, %v617
        %v621 = vsel %vm557, %v618, %v611
        %v623 = vadd.f32 %v604, %v621
        %vm624 = vcmask 1024
        %625 = vst.msk [vmem:[#allocation3] sm:$0x3] %vm624, %v623
        %v626 = vld [vmem:[#allocation4] sm:$0x3]
        %628 = vset.pattern.permute.xlu0 0
        %629 = vperm.xlu0 %628, %v563
        %v630 = vpop.permute.xlu0 %629
        %v632 = vmul.f32 %v630, %v626
        %634 = vset.pattern.permute.xlu0 0
        %635 = vperm.xlu0 %634, %v600
        %v636 = vpop.permute.xlu0 %635
        %639 = vset.pattern.permute.xlu0 0
        %640 = vperm.xlu0 %639, %v602
        %v641 = vpop.permute.xlu0 %640
        %v643 = vmul.f32 %v636, %v531
        %v644 = vmul.f32 %v641, %v535
        %v645 = vrot.slane %v643, 4
        %v646 = vadd.f32 %v643, %v645
        %v647 = vrot.slane %v646, 2
        %v648 = vadd.f32 %v646, %v647
        %v649 = vrot.slane %v648, 1
        %v650 = vadd.f32 %v648, %v649
        %v651 = vrot.slane %v644, 4
        %v652 = vadd.f32 %v644, %v651
        %v653 = vrot.slane %v652, 2
        %v654 = vadd.f32 %v652, %v653
        %v655 = vrot.slane %v654, 1
        %v656 = vadd.f32 %v654, %v655
        %v659 = vsel %vm557, %v656, %v650
        %v661 = vadd.f32 %v632, %v659
        %662 = vst [vmem:[#allocation4] sm:$0x3] %v661
        %v663 = vld [vmem:[#allocation5] sm:$0x3]
        %v664 = vrot.slane %v531, 4
        %v665 = vmax.f32 %v531, %v664
        %v666 = vrot.slane %v665, 2
        %v667 = vmax.f32 %v665, %v666
        %v668 = vrot.slane %v667, 1
        %v669 = vmax.f32 %v667, %v668
        %v670 = vrot.slane %v535, 4
        %v671 = vmax.f32 %v535, %v670
        %v672 = vrot.slane %v671, 2
        %v673 = vmax.f32 %v671, %v672
        %v674 = vrot.slane %v673, 1
        %v675 = vmax.f32 %v673, %v674
        %v678 = vsel %vm557, %v675, %v669
        %v680 = vmax.f32 %v663, %v678
        %681 = vst [vmem:[#allocation5] sm:$0x3] %v680
        %v682 = vld [vmem:[#allocation6] sm:$0x3]
        %v683 = vrot.slane %v531, 4
        %v684 = vadd.f32 %v531, %v683
        %v685 = vrot.slane %v684, 2
        %v686 = vadd.f32 %v684, %v685
        %v687 = vrot.slane %v686, 1
        %v688 = vadd.f32 %v686, %v687
        %v689 = vrot.slane %v535, 4
        %v690 = vadd.f32 %v535, %v689
        %v691 = vrot.slane %v690, 2
        %v692 = vadd.f32 %v690, %v691
        %v693 = vrot.slane %v692, 1
        %v694 = vadd.f32 %v692, %v693
        %v697 = vsel %vm557, %v694, %v688
        %v699 = vadd.f32 %v682, %v697
        %700 = vst [vmem:[#allocation6] sm:$0x3] %v699
        %701 = vst.msk [vmem:[#allocation2] sm:$0x3] %vm624, %v560
        // Predicated region
        $region81: #{tpu_custom_call.1} parent=55 // pred_check
          %p702 = pneg %p439
        $region82: #{tpu_custom_call.1} parent=55 // pred_check_branch
          %704 = sbr.rel (%p702) target = $region84
        $region83: #{tpu_custom_call.1} parent=55 // pred_region
          %v705 = vld [vmem:[#allocation3] sm:$0x3]
          %v706 = vrcp.pop %v705
          %v707 = vld [vmem:[#allocation4] sm:$0x3]
          %709 = vset.pattern.permute.xlu0 0
          %710 = vperm.xlu0 %709, %v706
          %v711 = vpop.permute.xlu0 %710
          %v713 = vmul.f32 %v707, %v711
          %v714 = vld [vmem:[#allocation5] sm:$0x3]
          %v715 = vld [vmem:[#allocation6] sm:$0x3]
          %v716 = vmul.f32 %v715, 0.125
          %v717 = vpack.c.bf16 %v713, %v713
          %v718 = vpack.c.bf16 %v714, %v714
          %v719 = vpack.c.bf16 %v716, %v716
          %v720 = vld [vmem:[#allocation12] sm:$0xf]
          %v721 = vld [vmem:[#allocation12 + $0x4] sm:$0xf]
          %v722 = vld [vmem:[#allocation12 + $0x8] sm:$0xf]
          %v723 = vld [vmem:[#allocation12 + $0xc] sm:$0xf]
          %v724 = vld [vmem:[#allocation12 + $0x10] sm:$0xf]
          %v725 = vld [vmem:[#allocation12 + $0x14] sm:$0xf]
          %v726 = vld [vmem:[#allocation12 + $0x18] sm:$0xf]
          %v727 = vld [vmem:[#allocation12 + $0x1c] sm:$0xf]
          %v728 = vld [vmem:[#allocation12 + $0x20] sm:$0xf]
          %v729 = vld [vmem:[#allocation12 + $0x24] sm:$0xf]
          %v730 = vld [vmem:[#allocation12 + $0x28] sm:$0xf]
          %v731 = vld [vmem:[#allocation12 + $0x2c] sm:$0xf]
          %v732 = vld [vmem:[#allocation12 + $0x30] sm:$0xf]
          %v733 = vld [vmem:[#allocation12 + $0x34] sm:$0xf]
          %v734 = vld [vmem:[#allocation12 + $0x38] sm:$0xf]
          %v735 = vld [vmem:[#allocation12 + $0x3c] sm:$0xf]
          %v736 = vld [vmem:[#allocation12 + $0x40] sm:$0xf]
          %v737 = vld [vmem:[#allocation12 + $0x44] sm:$0xf]
          %v738 = vld [vmem:[#allocation12 + $0x48] sm:$0xf]
          %v739 = vld [vmem:[#allocation12 + $0x4c] sm:$0xf]
          %v740 = vld [vmem:[#allocation12 + $0x50] sm:$0xf]
          %v741 = vld [vmem:[#allocation12 + $0x54] sm:$0xf]
          %v742 = vld [vmem:[#allocation12 + $0x58] sm:$0xf]
          %v743 = vld [vmem:[#allocation12 + $0x5c] sm:$0xf]
          %v744 = vld [vmem:[#allocation12 + $0x60] sm:$0xf]
          %v745 = vld [vmem:[#allocation12 + $0x64] sm:$0xf]
          %v746 = vld [vmem:[#allocation12 + $0x68] sm:$0xf]
          %v747 = vld [vmem:[#allocation12 + $0x6c] sm:$0xf]
          %v748 = vld [vmem:[#allocation12 + $0x70] sm:$0xf]
          %v749 = vld [vmem:[#allocation12 + $0x74] sm:$0xf]
          %v750 = vld [vmem:[#allocation12 + $0x78] sm:$0xf]
          %v751 = vld [vmem:[#allocation12 + $0x7c] sm:$0xf]
          %v752 = vld [vmem:[#allocation12 + $0x80] sm:$0xf]
          %v753 = vld [vmem:[#allocation12 + $0x84] sm:$0xf]
          %v754 = vld [vmem:[#allocation12 + $0x88] sm:$0xf]
          %v755 = vld [vmem:[#allocation12 + $0x8c] sm:$0xf]
          %v756 = vld [vmem:[#allocation12 + $0x90] sm:$0xf]
          %v757 = vld [vmem:[#allocation12 + $0x94] sm:$0xf]
          %v758 = vld [vmem:[#allocation12 + $0x98] sm:$0xf]
          %v759 = vld [vmem:[#allocation12 + $0x9c] sm:$0xf]
          %v760 = vld [vmem:[#allocation12 + $0xa0] sm:$0xf]
          %v761 = vld [vmem:[#allocation12 + $0xa4] sm:$0xf]
          %v762 = vld [vmem:[#allocation12 + $0xa8] sm:$0xf]
          %v763 = vld [vmem:[#allocation12 + $0xac] sm:$0xf]
          %v764 = vld [vmem:[#allocation12 + $0xb0] sm:$0xf]
          %v765 = vld [vmem:[#allocation12 + $0xb4] sm:$0xf]
          %v766 = vld [vmem:[#allocation12 + $0xb8] sm:$0xf]
          %v767 = vld [vmem:[#allocation12 + $0xbc] sm:$0xf]
          %v768 = vld [vmem:[%s4] sm:$0x1]
          %v770 = vlaneseq
          %v771 = vshrl.u32 %v770, 7
          %v772 = vsub.s32 0, %v771
          %v773 = vrot.slane %v768, %v772
          %v823 = vunpack.c.l.b16 %v720
          %v824 = vunpack.c.l.b16 %v721
          %v825 = vunpack.c.l.b16 %v722
          %v826 = vunpack.c.l.b16 %v723
          %v827 = vunpack.c.l.b16 %v724
          %v828 = vunpack.c.l.b16 %v725
          %v829 = vunpack.c.l.b16 %v726
          %v830 = vunpack.c.l.b16 %v727
          %v831 = vunpack.c.l.b16 %v728
          %v832 = vunpack.c.l.b16 %v729
          %v833 = vunpack.c.l.b16 %v730
          %v834 = vunpack.c.l.b16 %v731
          %v835 = vunpack.c.l.b16 %v732
          %v836 = vunpack.c.l.b16 %v733
          %v837 = vunpack.c.l.b16 %v734
          %v838 = vunpack.c.l.b16 %v735
          %v839 = vunpack.c.l.b16 %v736
          %v840 = vunpack.c.l.b16 %v737
          %v841 = vunpack.c.l.b16 %v738
          %v842 = vunpack.c.l.b16 %v739
          %v843 = vunpack.c.l.b16 %v740
          %v844 = vunpack.c.l.b16 %v741
          %v845 = vunpack.c.l.b16 %v742
          %v846 = vunpack.c.l.b16 %v743
          %v847 = vunpack.c.l.b16 %v744
          %v848 = vunpack.c.l.b16 %v745
          %v849 = vunpack.c.l.b16 %v746
          %v850 = vunpack.c.l.b16 %v747
          %v851 = vunpack.c.l.b16 %v748
          %v852 = vunpack.c.l.b16 %v749
          %v853 = vunpack.c.l.b16 %v750
          %v854 = vunpack.c.l.b16 %v751
          %v855 = vunpack.c.l.b16 %v752
          %v856 = vunpack.c.l.b16 %v753
          %v857 = vunpack.c.l.b16 %v754
          %v858 = vunpack.c.l.b16 %v755
          %v859 = vunpack.c.l.b16 %v756
          %v860 = vunpack.c.l.b16 %v757
          %v861 = vunpack.c.l.b16 %v758
          %v862 = vunpack.c.l.b16 %v759
          %v863 = vunpack.c.l.b16 %v760
          %v864 = vunpack.c.l.b16 %v761
          %v865 = vunpack.c.l.b16 %v762
          %v866 = vunpack.c.l.b16 %v763
          %v867 = vunpack.c.l.b16 %v764
          %v868 = vunpack.c.l.b16 %v765
          %v869 = vunpack.c.l.b16 %v766
          %v870 = vunpack.c.l.b16 %v767
          %v871 = vpack.c.b16 %v824, %v823
          %v872 = vpack.c.b16 %v826, %v825
          %v873 = vpack.c.b16 %v828, %v827
          %v874 = vpack.c.b16 %v830, %v829
          %v875 = vpack.c.b16 %v832, %v831
          %v876 = vpack.c.b16 %v834, %v833
          %v877 = vpack.c.b16 %v836, %v835
          %v878 = vpack.c.b16 %v838, %v837
          %v879 = vpack.c.b16 %v840, %v839
          %v880 = vpack.c.b16 %v842, %v841
          %v881 = vpack.c.b16 %v844, %v843
          %v882 = vpack.c.b16 %v846, %v845
          %v883 = vpack.c.b16 %v848, %v847
          %v884 = vpack.c.b16 %v850, %v849
          %v885 = vpack.c.b16 %v852, %v851
          %v886 = vpack.c.b16 %v854, %v853
          %v887 = vpack.c.b16 %v856, %v855
          %v888 = vpack.c.b16 %v858, %v857
          %v889 = vpack.c.b16 %v860, %v859
          %v890 = vpack.c.b16 %v862, %v861
          %v891 = vpack.c.b16 %v864, %v863
          %v892 = vpack.c.b16 %v866, %v865
          %v893 = vpack.c.b16 %v868, %v867
          %v894 = vpack.c.b16 %v870, %v869
          %919 = vmatprep.subr.bf16.mxu0 0
          %920 = vmatpush1.bf16.msra.mxu0 %v871
          %921 = vmatprep.subr.bf16.mxu0 0
          %922 = vmatpush1.bf16.msra.mxu0 %v872
          %923 = vmatprep.subr.bf16.mxu0 0
          %924 = vmatpush1.bf16.msra.mxu0 %v873
          %925 = vmatprep.subr.bf16.mxu0 0
          %926 = vmatpush1.bf16.msra.mxu0 %v874
          %927 = vmatprep.subr.bf16.mxu0 0
          %928 = vmatpush1.bf16.msra.mxu0 %v875
          %929 = vmatprep.subr.bf16.mxu0 0
          %930 = vmatpush1.bf16.msra.mxu0 %v876
          %931 = vmatprep.subr.bf16.mxu0 0
          %932 = vmatpush1.bf16.msra.mxu0 %v877
          %933 = vmatprep.subr.bf16.mxu0 0
          %934 = vmatpush1.bf16.msra.mxu0 %v878
          %935 = vmatprep.subr.bf16.mxu0 0
          %936 = vmatpush1.bf16.msra.mxu0 %v879
          %937 = vmatprep.subr.bf16.mxu0 0
          %938 = vmatpush1.bf16.msra.mxu0 %v880
          %939 = vmatprep.subr.bf16.mxu0 0
          %940 = vmatpush1.bf16.msra.mxu0 %v881
          %941 = vmatprep.subr.bf16.mxu0 0
          %942 = vmatpush1.bf16.msra.mxu0 %v882
          %943 = vmatprep.subr.bf16.mxu0 0
          %944 = vmatpush1.bf16.msra.mxu0 %v883
          %945 = vmatprep.subr.bf16.mxu0 0
          %946 = vmatpush1.bf16.msra.mxu0 %v884
          %947 = vmatprep.subr.bf16.mxu0 0
          %948 = vmatpush1.bf16.msra.mxu0 %v885
          %949 = vmatprep.subr.bf16.mxu0 0
          %950 = vmatpush1.bf16.msra.mxu0 %v886
          %951 = vmatprep.mubr.bf16.mxu0 %v718
          %952 = vmatmul.mubr.bf16.gmra.mrb[0].mxu0 %v717
          %v953 = vpop.f32.mrb[0].mxu0
          %v954 = vadd.f32 %v773, %v953
          %v955 = vpop.f32.mrb[0].mxu0
          %v956 = vpop.f32.mrb[0].mxu0
          %v957 = vpop.f32.mrb[0].mxu0
          %958 = vdwg.mxu0
          %959 = vmatprep.subr.bf16.mxu0 0
          %960 = vmatpush1.bf16.msra.mxu0 %v887
          %961 = vmatprep.subr.bf16.mxu0 0
          %962 = vmatpush1.bf16.msra.mxu0 %v888
          %963 = vmatprep.subr.bf16.mxu0 0
          %964 = vmatpush1.bf16.msra.mxu0 %v889
          %965 = vmatprep.subr.bf16.mxu0 0
          %966 = vmatpush1.bf16.msra.mxu0 %v890
          %967 = vmatprep.subr.bf16.mxu0 0
          %968 = vmatpush1.bf16.msra.mxu0 %v891
          %969 = vmatprep.subr.bf16.mxu0 0
          %970 = vmatpush1.bf16.msra.mxu0 %v892
          %971 = vmatprep.subr.bf16.mxu0 0
          %972 = vmatpush1.bf16.msra.mxu0 %v893
          %973 = vmatprep.subr.bf16.mxu0 0
          %974 = vmatpush1.bf16.msra.mxu0 %v894
          %975 = vmatprep.subr.bf16.mxu0 0
          %976 = vmatpush1.bf16.msra.mxu0 0
          %977 = vmatprep.subr.bf16.mxu0 0
          %978 = vmatpush1.bf16.msra.mxu0 0
          %979 = vmatprep.subr.bf16.mxu0 0
          %980 = vmatpush1.bf16.msra.mxu0 0
          %981 = vmatprep.subr.bf16.mxu0 0
          %982 = vmatpush1.bf16.msra.mxu0 0
          %983 = vmatprep.subr.bf16.mxu0 0
          %984 = vmatpush1.bf16.msra.mxu0 0
          %985 = vmatprep.subr.bf16.mxu0 0
          %986 = vmatpush1.bf16.msra.mxu0 0
          %987 = vmatprep.subr.bf16.mxu0 0
          %988 = vmatpush1.bf16.msra.mxu0 0
          %989 = vmatprep.subr.bf16.mxu0 0
          %990 = vmatpush1.bf16.msra.mxu0 0
          %991 = vmatprep.mubr.bf16.mxu0 0
          %992 = vmatmul.mubr.bf16.gmra.mrb[0].mxu0 %v719
          %v993 = vpop.f32.mrb[0].mxu0
          %v994 = vadd.f32 %v954, %v993
          %v995 = vpop.f32.mrb[0].mxu0
          %v996 = vpop.f32.mrb[0].mxu0
          %v997 = vpop.f32.mrb[0].mxu0
          %998 = vdwg.mxu0
          %v999 = vmax.f32 %v994, 0.0
          %v1000 = vpack.c.bf16 %v999, %v999
          %v1001 = vld [vmem:[#allocation13] sm:$0xf]
          %v1002 = vld [vmem:[#allocation13 + $0x4] sm:$0xf]
          %v1003 = vld [vmem:[#allocation13 + $0x8] sm:$0xf]
          %v1004 = vld [vmem:[#allocation13 + $0xc] sm:$0xf]
          %v1005 = vld [vmem:[#allocation13 + $0x10] sm:$0xf]
          %v1006 = vld [vmem:[#allocation13 + $0x14] sm:$0xf]
          %v1007 = vld [vmem:[#allocation13 + $0x18] sm:$0xf]
          %v1008 = vld [vmem:[#allocation13 + $0x1c] sm:$0xf]
          %v1009 = vld [vmem:[#allocation13 + $0x20] sm:$0xf]
          %v1010 = vld [vmem:[#allocation13 + $0x24] sm:$0xf]
          %v1011 = vld [vmem:[#allocation13 + $0x28] sm:$0xf]
          %v1012 = vld [vmem:[#allocation13 + $0x2c] sm:$0xf]
          %v1013 = vld [vmem:[#allocation13 + $0x30] sm:$0xf]
          %v1014 = vld [vmem:[#allocation13 + $0x34] sm:$0xf]
          %v1015 = vld [vmem:[#allocation13 + $0x38] sm:$0xf]
          %v1016 = vld [vmem:[#allocation13 + $0x3c] sm:$0xf]
          %v1017 = vld [vmem:[%s6] sm:$0x1]
          %v1019 = vlaneseq
          %v1020 = vshrl.u32 %v1019, 7
          %v1021 = vsub.s32 0, %v1020
          %v1022 = vrot.slane %v1017, %v1021
          %v1040 = vunpack.c.l.b16 %v1001
          %v1041 = vunpack.c.l.b16 %v1002
          %v1042 = vunpack.c.l.b16 %v1003
          %v1043 = vunpack.c.l.b16 %v1004
          %v1044 = vunpack.c.l.b16 %v1005
          %v1045 = vunpack.c.l.b16 %v1006
          %v1046 = vunpack.c.l.b16 %v1007
          %v1047 = vunpack.c.l.b16 %v1008
          %v1048 = vunpack.c.l.b16 %v1009
          %v1049 = vunpack.c.l.b16 %v1010
          %v1050 = vunpack.c.l.b16 %v1011
          %v1051 = vunpack.c.l.b16 %v1012
          %v1052 = vunpack.c.l.b16 %v1013
          %v1053 = vunpack.c.l.b16 %v1014
          %v1054 = vunpack.c.l.b16 %v1015
          %v1055 = vunpack.c.l.b16 %v1016
          %v1056 = vpack.c.b16 %v1041, %v1040
          %v1057 = vpack.c.b16 %v1043, %v1042
          %v1058 = vpack.c.b16 %v1045, %v1044
          %v1059 = vpack.c.b16 %v1047, %v1046
          %v1060 = vpack.c.b16 %v1049, %v1048
          %v1061 = vpack.c.b16 %v1051, %v1050
          %v1062 = vpack.c.b16 %v1053, %v1052
          %v1063 = vpack.c.b16 %v1055, %v1054
          %1072 = vmatprep.subr.bf16.mxu0 0
          %1073 = vmatpush1.bf16.msra.mxu0 %v1056
          %1074 = vmatprep.subr.bf16.mxu0 0
          %1075 = vmatpush1.bf16.msra.mxu0 %v1057
          %1076 = vmatprep.subr.bf16.mxu0 0
          %1077 = vmatpush1.bf16.msra.mxu0 %v1058
          %1078 = vmatprep.subr.bf16.mxu0 0
          %1079 = vmatpush1.bf16.msra.mxu0 %v1059
          %1080 = vmatprep.subr.bf16.mxu0 0
          %1081 = vmatpush1.bf16.msra.mxu0 %v1060
          %1082 = vmatprep.subr.bf16.mxu0 0
          %1083 = vmatpush1.bf16.msra.mxu0 %v1061
          %1084 = vmatprep.subr.bf16.mxu0 0
          %1085 = vmatpush1.bf16.msra.mxu0 %v1062
          %1086 = vmatprep.subr.bf16.mxu0 0
          %1087 = vmatpush1.bf16.msra.mxu0 %v1063
          %1088 = vmatprep.subr.bf16.mxu0 0
          %1089 = vmatpush1.bf16.msra.mxu0 0
          %1090 = vmatprep.subr.bf16.mxu0 0
          %1091 = vmatpush1.bf16.msra.mxu0 0
          %1092 = vmatprep.subr.bf16.mxu0 0
          %1093 = vmatpush1.bf16.msra.mxu0 0
          %1094 = vmatprep.subr.bf16.mxu0 0
          %1095 = vmatpush1.bf16.msra.mxu0 0
          %1096 = vmatprep.subr.bf16.mxu0 0
          %1097 = vmatpush1.bf16.msra.mxu0 0
          %1098 = vmatprep.subr.bf16.mxu0 0
          %1099 = vmatpush1.bf16.msra.mxu0 0
          %1100 = vmatprep.subr.bf16.mxu0 0
          %1101 = vmatpush1.bf16.msra.mxu0 0
          %1102 = vmatprep.subr.bf16.mxu0 0
          %1103 = vmatpush1.bf16.msra.mxu0 0
          %1104 = vmatprep.mubr.bf16.mxu0 0
          %1105 = vmatmul.mubr.bf16.gmra.mrb[0].mxu0 %v1000
          %v1106 = vpop.f32.mrb[0].mxu0
          %v1107 = vadd.f32 %v1022, %v1106
          %v1108 = vpop.f32.mrb[0].mxu0
          %v1109 = vpop.f32.mrb[0].mxu0
          %v1110 = vpop.f32.mrb[0].mxu0
          %1111 = vdwg.mxu0
          %v1112 = vmax.f32 %v1107, 0.0
          %v1113 = vpack.c.bf16 %v1112, %v1112
          %v1114 = vld [vmem:[#allocation15] sm:$0xf]
          %v1115 = vld [vmem:[#allocation15 + $0x4] sm:$0xf]
          %v1116 = vld [vmem:[#allocation15 + $0x8] sm:$0xf]
          %v1117 = vld [vmem:[#allocation15 + $0xc] sm:$0xf]
          %v1118 = vld [vmem:[#allocation15 + $0x10] sm:$0xf]
          %v1119 = vld [vmem:[#allocation15 + $0x14] sm:$0xf]
          %v1120 = vld [vmem:[#allocation15 + $0x18] sm:$0xf]
          %v1121 = vld [vmem:[#allocation15 + $0x1c] sm:$0xf]
          %v1122 = vld [vmem:[#allocation15 + $0x20] sm:$0xf]
          %v1123 = vld [vmem:[#allocation15 + $0x24] sm:$0xf]
          %v1124 = vld [vmem:[#allocation15 + $0x28] sm:$0xf]
          %v1125 = vld [vmem:[#allocation15 + $0x2c] sm:$0xf]
          %v1126 = vld [vmem:[#allocation15 + $0x30] sm:$0xf]
          %v1127 = vld [vmem:[#allocation15 + $0x34] sm:$0xf]
          %v1128 = vld [vmem:[#allocation15 + $0x38] sm:$0xf]
          %v1129 = vld [vmem:[#allocation15 + $0x3c] sm:$0xf]
          %v1130 = vld [vmem:[%s8] sm:$0x1]
          %v1132 = vlaneseq
          %v1133 = vshrl.u32 %v1132, 7
          %v1134 = vsub.s32 0, %v1133
          %v1135 = vrot.slane %v1130, %v1134
          %v1153 = vunpack.c.l.b16 %v1114
          %v1154 = vunpack.c.l.b16 %v1115
          %v1155 = vunpack.c.l.b16 %v1116
          %v1156 = vunpack.c.l.b16 %v1117
          %v1157 = vunpack.c.l.b16 %v1118
          %v1158 = vunpack.c.l.b16 %v1119
          %v1159 = vunpack.c.l.b16 %v1120
          %v1160 = vunpack.c.l.b16 %v1121
          %v1161 = vunpack.c.l.b16 %v1122
          %v1162 = vunpack.c.l.b16 %v1123
          %v1163 = vunpack.c.l.b16 %v1124
          %v1164 = vunpack.c.l.b16 %v1125
          %v1165 = vunpack.c.l.b16 %v1126
          %v1166 = vunpack.c.l.b16 %v1127
          %v1167 = vunpack.c.l.b16 %v1128
          %v1168 = vunpack.c.l.b16 %v1129
          %v1169 = vpack.c.b16 %v1154, %v1153
          %v1170 = vpack.c.b16 %v1156, %v1155
          %v1171 = vpack.c.b16 %v1158, %v1157
          %v1172 = vpack.c.b16 %v1160, %v1159
          %v1173 = vpack.c.b16 %v1162, %v1161
          %v1174 = vpack.c.b16 %v1164, %v1163
          %v1175 = vpack.c.b16 %v1166, %v1165
          %v1176 = vpack.c.b16 %v1168, %v1167
          %1185 = vmatprep.subr.bf16.mxu0 0
          %1186 = vmatpush1.bf16.msra.mxu0 %v1169
          %1187 = vmatprep.subr.bf16.mxu0 0
          %1188 = vmatpush1.bf16.msra.mxu0 %v1170
          %1189 = vmatprep.subr.bf16.mxu0 0
          %1190 = vmatpush1.bf16.msra.mxu0 %v1171
          %1191 = vmatprep.subr.bf16.mxu0 0
          %1192 = vmatpush1.bf16.msra.mxu0 %v1172
          %1193 = vmatprep.subr.bf16.mxu0 0
          %1194 = vmatpush1.bf16.msra.mxu0 %v1173
          %1195 = vmatprep.subr.bf16.mxu0 0
          %1196 = vmatpush1.bf16.msra.mxu0 %v1174
          %1197 = vmatprep.subr.bf16.mxu0 0
          %1198 = vmatpush1.bf16.msra.mxu0 %v1175
          %1199 = vmatprep.subr.bf16.mxu0 0
          %1200 = vmatpush1.bf16.msra.mxu0 %v1176
          %1201 = vmatprep.subr.bf16.mxu0 0
          %1202 = vmatpush1.bf16.msra.mxu0 0
          %1203 = vmatprep.subr.bf16.mxu0 0
          %1204 = vmatpush1.bf16.msra.mxu0 0
          %1205 = vmatprep.subr.bf16.mxu0 0
          %1206 = vmatpush1.bf16.msra.mxu0 0
          %1207 = vmatprep.subr.bf16.mxu0 0
          %1208 = vmatpush1.bf16.msra.mxu0 0
          %1209 = vmatprep.subr.bf16.mxu0 0
          %1210 = vmatpush1.bf16.msra.mxu0 0
          %1211 = vmatprep.subr.bf16.mxu0 0
          %1212 = vmatpush1.bf16.msra.mxu0 0
          %1213 = vmatprep.subr.bf16.mxu0 0
          %1214 = vmatpush1.bf16.msra.mxu0 0
          %1215 = vmatprep.subr.bf16.mxu0 0
          %1216 = vmatpush1.bf16.msra.mxu0 0
          %1217 = vmatprep.mubr.bf16.mxu0 0
          %1218 = vmatmul.mubr.bf16.gmra.mrb[0].mxu0 %v1113
          %v1219 = vpop.f32.mrb[0].mxu0
          %v1220 = vadd.f32 %v1135, %v1219
          %v1221 = vpop.f32.mrb[0].mxu0
          %v1222 = vpop.f32.mrb[0].mxu0
          %v1223 = vpop.f32.mrb[0].mxu0
          %1224 = vdwg.mxu0
          %1225 = vst [vmem:[%s436] sm:$0x3] %v1220
        $region84: #{tpu_custom_call.1} parent=55 // pred_fallthru
          _
        %s1226 = sand.u32 %s255, 1
        %s1227 = scalar_lea.sflag [#allocation9], %s1226
        %s1228 = sand.u32 %s255, 1
        %s1229 = smul.addr %s1228, 2
        %s1230 = scalar_lea.vmem [#allocation16], %s1229
        // Predicated region
        $region85: #{tpu_custom_call.1} parent=55 // pred_check
          %p1231 = pneg %p265
        $region86: #{tpu_custom_call.1} parent=55 // pred_check_branch
          %1233 = sbr.rel (%p1231) target = $region88
        $region87: #{tpu_custom_call.1} parent=55 // pred_region
          %s1235 = ssub.s32 32, 32
          %1236 = vsyncadd %s1227, %s1235
          %s1237 = sadd.s32 %s34, %s33
          %s1238 = smul.addr %s1237, 32
          %s1239 = scalar_lea.hbm %s9, %s1238
          %s1241 = sshll.u32 %s1230, 4
          %s1242 = int_to_ptr.vmem [resolvable:$true] %s1241
          %1244 = dma.vmem_to_hbm [thread:$0]  %s1242, 32, %s1239, %s1227
        $region88: #{tpu_custom_call.1} parent=55 // pred_fallthru
          _
      $region56: #{tpu_custom_call.1} parent=5 // pred_fallthru
        _
      %p1245 = scmp.le.s32.totalorder 2, %s23
      // Predicated region
      $region89: #{tpu_custom_call.1} parent=5 // pred_check
        %p1246 = pneg %p1245
      $region90: #{tpu_custom_call.1} parent=5 // pred_check_branch
        %1248 = sbr.rel (%p1246) target = $region92
      $region91: #{tpu_custom_call.1} parent=5 // pred_region
        %s1249 = ssub.s32 %s23, 2
        // Predicated region
        $region93: #{tpu_custom_call.1} parent=91 // pred_check
          %p1250 = pneg %p271
        $region94: #{tpu_custom_call.1} parent=91 // pred_check_branch
          %1252 = sbr.rel (%p1250) target = $region96
        $region95: #{tpu_custom_call.1} parent=91 // pred_region
          %s1253 = sand.u32 %s256, 1
          %s1254 = scalar_lea.sflag [#allocation9], %s1253
          %s1255 = sand.u32 %s256, 1
          %s1256 = smul.addr %s1255, 2
          %s1257 = scalar_lea.vmem [#allocation16], %s1256
          %1258 = dma.done %s1254, 32
        $region96: #{tpu_custom_call.1} parent=91 // pred_fallthru
          _
      $region92: #{tpu_custom_call.1} parent=5 // pred_fallthru
        _
    $region6: #{tpu_custom_call.1} parent=1 // loop_footer
      %s27 = sadd.s32 1, %s23
    $region7: #{tpu_custom_call.1} parent=1 // loop_footer_branch
      %22 = sbr.rel target = $region3
    $region8: #{tpu_custom_call.1} parent=1 // loop_exit
      _
    %1259 = vsyncpa [#allocation8], 1
    %s1260 = scalar_lea.sflag [#allocation8], 1
    %1261 = vsyncpa %s1260, 1
    %1262 = vsyncpa [#allocation11], 1
    %1263 = vsyncpa [#allocation14], 1
    %1264 = vsyncpa [#allocation9], 1
    %s1265 = scalar_lea.sflag [#allocation9], 1
    %1266 = vsyncpa %s1265, 1

</llo_original>
